<compile_context>
chip_gen: v7x
topology: tpu7x:2x2x1
jax: 0.10.0
libtpu: 0.0.40
codegen_flags: <defaults>
</compile_context>

<pallas_src>
import functools
import math

import jax
import jax.numpy as jnp
from jax.experimental import pallas as pl
from jax.experimental.pallas import tpu as pltpu

SA_K = 7             # spatial-attention conv kernel size
SA_PAD = SA_K // 2   # = 3


# ----------------------------- kernel -----------------------------
def _cbam_kernel(x_ref, eca_band_ref, masks_ref, sa_w_ref, o_ref, *, H, W):
    # x_ref        : (Nb, C, H*W) VMEM  -- lane-dense main data path
    # eca_band_ref : (C, C)       VMEM  -- precomputed ECA band matrix (grid invariant)
    # masks_ref    : (14, H*W)    VMEM  -- rows 0..6: dw border masks, 7..13: dh masks
    # sa_w_ref     : (98,)        SMEM  -- 2x7x7 spatial-conv taps (scalars)
    Nb, C, HW = x_ref.shape

    # ---------------- channel attention (ECA) ----------------
    # GAP with f32 accumulation straight from the ref (no full-tile f32 copy).
    gap = jnp.mean(x_ref[...], axis=2, dtype=jnp.float32)               # (Nb, C)
    ca = jax.nn.sigmoid(
        jnp.dot(gap, eca_band_ref[...], preferred_element_type=jnp.float32))
    # The only full-size f32 temporary in the kernel.
    x_ca = x_ref[...].astype(jnp.float32) * ca[:, :, None]              # (Nb, C, HW)

    # ---------------- spatial attention (CBAM, 7x7 conv via rolls) ----------------
    avg_map = jnp.mean(x_ca, axis=1)                                     # (Nb, HW)
    max_map = jnp.max(x_ca, axis=1)                                      # (Nb, HW)
    masks = masks_ref[...]                                               # (14, HW)

    # 7 dw-shifted, border-masked copies of each map (shared across all dh).
    shifted = []
    for dw in range(SA_K):
        s = dw - SA_PAD
        if s == 0:
            shifted.append((avg_map, max_map))
        else:
            sh = (-s) % HW                       # rolled[p] = map[p + s]
            cm = masks[dw:dw + 1]                # (1, HW) column-validity mask
            shifted.append((pltpu.roll(avg_map, shift=sh, axis=1) * cm,
                            pltpu.roll(max_map, shift=sh, axis=1) * cm))

    acc = jnp.zeros((Nb, HW), jnp.float32)
    for dh in range(SA_K):
        g = jnp.zeros((Nb, HW), jnp.float32)
        for dw in range(SA_K):
            a, m = shifted[dw]
            g = g + sa_w_ref[dh * SA_K + dw] * a \
                  + sa_w_ref[SA_K * SA_K + dh * SA_K + dw] * m
        s = (dh - SA_PAD) * W
        if s == 0:
            acc = acc + g
        else:
            rm = masks[SA_K + dh:SA_K + dh + 1]   # (1, HW) row-validity mask
            acc = acc + pltpu.roll(g, shift=(-s) % HW, axis=1) * rm
    sa = jax.nn.sigmoid(acc)                                             # (Nb, HW)

    # Lane-dense, full-lane-width store.
    o_ref[...] = (x_ca * sa[:, None, :]).astype(o_ref.dtype)


# ----------------------------- wrapper / parameter plumbing -----------------------------
def eca_kernel_size(channels, gamma=2, b=1):
    t = int(abs((math.log2(channels) + b) / gamma))
    return t if t % 2 == 1 else t + 1


def _eca_band(eca_w, c):
    """(k,) ECA conv1d taps -> (C, C) band matrix so that
    (gap @ band)[n, o] = sum_t eca_w[t] * gap[n, o + t - pad] (zero padded)."""
    k = eca_w.shape[0]
    pad = (k - 1) // 2
    src = jnp.arange(c)[:, None]
    out = jnp.arange(c)[None, :]
    d = src - out + pad
    valid = (d >= 0) & (d < k)
    return jnp.where(valid, eca_w[jnp.clip(d, 0, k - 1)], 0.0).astype(jnp.float32)


def _sa_border_masks(h, w):
    """(14, H*W) f32 0/1 masks: rows 0..6 validity of column shift dw-3,
    rows 7..13 validity of row shift dh-3 (implements the conv's zero padding)."""
    hw = h * w
    lane = jnp.arange(hw)
    col = lane % w
    row = lane // w
    rows = []
    for d in range(SA_K):
        s = d - SA_PAD
        rows.append(((col + s >= 0) & (col + s < w)).astype(jnp.float32))
    for d in range(SA_K):
        s = d - SA_PAD
        rows.append(((row + s >= 0) & (row + s < h)).astype(jnp.float32))
    return jnp.stack(rows, axis=0)


def _vmem_limit_bytes():
    """Scoped-VMEM limit derived from the actual chip (v5e/v6e: 128 MiB physical,
    v7x: 64 MiB), leaving headroom for Mosaic-internal scratch."""
    cap = 64 << 20
    try:
        cap = int(getattr(pltpu.get_tpu_info(), "vmem_capacity_bytes", cap))
    except Exception:
        pass
    return int(min(cap * 3 // 4, 96 << 20))


def _pick_block_batch(n, c, hw, in_itemsize, out_itemsize, budget_bytes):
    """Images per grid step.  Budgets the real per-step footprint
    (double-buffered input + output tiles, the single full-tile f32 temporary and
    the small per-image map temporaries) and keeps >=4 (or >=2) grid steps so the
    parallel batch axis can shard across TensorCores and still pipeline DMA."""
    per_image = c * hw * (2 * in_itemsize + 2 * out_itemsize + 4) + 20 * hw * 4
    nb = max(1, min(n, budget_bytes // max(per_image, 1)))
    if n >= 4:
        nb = min(nb, n // 4)
    elif n >= 2:
        nb = min(nb, n // 2)
    return max(1, nb)


def cbam_pallas(x, eca_w, sa_w, block_batch=None):
    N, C, H, W = x.shape
    HW = H * W
    x2 = x.reshape(N, C, HW)        # free: same row-major layout, lane-dense

    vmem_limit = _vmem_limit_bytes()
    nb = block_batch or _pick_block_batch(
        N, C, HW, x.dtype.itemsize, x.dtype.itemsize,
        budget_bytes=min(24 << 20, vmem_limit // 2))

    # Pad the batch to a multiple of nb instead of shrinking the tile.
    n_pad = (-N) % nb
    if n_pad:
        x2 = jnp.concatenate([x2, jnp.zeros((n_pad, C, HW), x2.dtype)], axis=0)
    Np = N + n_pad
    grid = (Np // nb,)

    band = _eca_band(eca_w.astype(jnp.float32), C)            # (C, C) grid-invariant
    masks = _sa_border_masks(H, W)                             # (14, HW) grid-invariant
    sa_flat = sa_w.reshape(-1).astype(jnp.float32)             # (98,) SMEM scalars

    kernel = functools.partial(_cbam_kernel, H=H, W=W)
    out = pl.pallas_call(
        kernel,
        out_shape=jax.ShapeDtypeStruct((Np, C, HW), x.dtype),
        grid=grid,
        in_specs=[
            pl.BlockSpec((nb, C, HW), lambda n: (n, 0, 0)),
            pl.BlockSpec((C, C), lambda n: (0, 0)),
            pl.BlockSpec((2 * SA_K, HW), lambda n: (0, 0)),
            pl.BlockSpec(memory_space=pltpu.MemorySpace.SMEM),   # conv taps (scalars)
        ],
        out_specs=pl.BlockSpec((nb, C, HW), lambda n: (n, 0, 0)),
        compiler_params=pltpu.CompilerParams(
            dimension_semantics=("parallel",),    # batch axis -> both TCs on v7x
            vmem_limit_bytes=vmem_limit,
        ),
    )(x2, band, masks, sa_flat)

    if n_pad:
        out = out[:N]
    return out.reshape(N, C, H, W)


# ----------------------------- pure-JAX reference for validation -----------------------------
def cbam_ref(x, eca_w, sa_w):
    N, C, H, W = x.shape
    k = eca_w.shape[0]
    pad = (k - 1) // 2
    gap = x.mean(axis=(2, 3))[:, None, :]                          # (N, 1, C)
    ca_logit = jax.lax.conv_general_dilated(
        gap, eca_w.reshape(1, 1, k), (1,), [(pad, pad)],
        dimension_numbers=("NCH", "OIH", "NCH"),
        precision=jax.lax.Precision.HIGHEST)[:, 0]                 # (N, C)
    x_ca = x * jax.nn.sigmoid(ca_logit)[:, :, None, None]
    maps = jnp.stack([x_ca.mean(axis=1), x_ca.max(axis=1)], axis=1)  # (N, 2, H, W)
    logit = jax.lax.conv_general_dilated(
        maps, sa_w.reshape(1, 2, SA_K, SA_K), (1, 1),
        [(SA_PAD, SA_PAD), (SA_PAD, SA_PAD)],
        dimension_numbers=("NCHW", "OIHW", "NCHW"),
        precision=jax.lax.Precision.HIGHEST)
    return x_ca * jax.nn.sigmoid(logit)


if __name__ == "__main__":
    N, C, H, W = 2, 8, 16, 16
    key = jax.random.PRNGKey(0)
    k_x, k_eca, k_sa = jax.random.split(key, 3)

    x = jax.random.normal(k_x, (N, C, H, W), jnp.float32)

    # ECA conv1d(1, 1, k, padding=k//2, bias=False) weight  (k = 3 for C = 8)
    ksz = eca_kernel_size(C)
    eca_w = jax.random.normal(k_eca, (ksz,), jnp.float32) * 0.5
    # CBAM spatial conv2d(2, 1, 7, padding=3, bias=False) weight
    sa_w = jax.random.normal(k_sa, (2, SA_K, SA_K), jnp.float32) * 0.1

    out = cbam_pallas(x, eca_w, sa_w)
    jax.block_until_ready(out)

    ref = cbam_ref(x, eca_w, sa_w)
    assert out.shape == (N, C, H, W)
    err = float(jnp.max(jnp.abs(out - ref)))
    assert jnp.allclose(out, ref, atol=2e-3, rtol=1e-3), (
        f"mismatch vs reference (max abs err {err})")

    print("KERNEL_OK")
</pallas_src>

<mosaic_0001>
module attributes {stable_mosaic.version = 11 : i64} {
  func.func @_cbam_kernel(%arg0: i32, %arg1: memref<1x8x256xf32, #tpu.memory_space<vmem>>, %arg2: memref<8x8xf32, #tpu.memory_space<vmem>>, %arg3: memref<14x256xf32, #tpu.memory_space<vmem>>, %arg4: memref<98xf32, #tpu.memory_space<smem>>, %arg5: memref<1x8x256xf32, #tpu.memory_space<vmem>>) attributes {dimension_semantics = [#tpu.dimension_semantics<parallel>], iteration_bounds = array<i64: 2>, scalar_prefetch = 0 : i64, scratch_operands = 0 : i64, tpu.core_type = #tpu.core_type<tc>, window_params = [{transform_indices = @transform_0, window_bounds = array<i64: 1, 8, 256>}, {pipeline_mode = #tpu.pipeline_mode<synchronous>, transform_indices = @transform_1, window_bounds = array<i64: 8, 8>}, {pipeline_mode = #tpu.pipeline_mode<synchronous>, transform_indices = @transform_2, window_bounds = array<i64: 14, 256>}, {transform_indices = @transform_3, window_bounds = array<i64: 98>}, {transform_indices = @transform_4, window_bounds = array<i64: 1, 8, 256>}]} {
    %c0 = arith.constant 0 : index
    %c0_0 = arith.constant 0 : index
    %c0_1 = arith.constant 0 : index
    %0 = vector.load %arg1[%c0, %c0_0, %c0_1] : memref<1x8x256xf32, #tpu.memory_space<vmem>>, vector<1x8x256xf32>
    %cst = arith.constant dense<0.000000e+00> : vector<1x8xf32>
    %1 = vector.multi_reduction <add>, %0, %cst [2] : vector<1x8x256xf32> to vector<1x8xf32>
    %cst_2 = arith.constant 2.560000e+02 : f32
    %2 = vector.broadcast %cst_2 : f32 to vector<1x8xf32>
    %3 = arith.divf %1, %2 : vector<1x8xf32>
    %c0_3 = arith.constant 0 : index
    %c0_4 = arith.constant 0 : index
    %4 = vector.load %arg2[%c0_3, %c0_4] : memref<8x8xf32, #tpu.memory_space<vmem>>, vector<8x8xf32>
    %cst_5 = arith.constant dense<0.000000e+00> : vector<1x8xf32>
    %5 = tpu.matmul %3, %4, %cst_5 {dimension_numbers = #tpu.dot_dimension_numbers<[1], [0], [0], [1], [0, 0, 1, 1], [], []>} : vector<1x8xf32>, vector<8x8xf32>, vector<1x8xf32> -> vector<1x8xf32>
    %6 = arith.negf %5 : vector<1x8xf32>
    %7 = math.exp %6 : vector<1x8xf32>
    %cst_6 = arith.constant 1.000000e+00 : f32
    %8 = vector.broadcast %cst_6 : f32 to vector<1x8xf32>
    %9 = arith.addf %8, %7 : vector<1x8xf32>
    %10 = arith.divf %8, %9 : vector<1x8xf32>
    %c0_7 = arith.constant 0 : index
    %c0_8 = arith.constant 0 : index
    %c0_9 = arith.constant 0 : index
    %11 = vector.load %arg1[%c0_7, %c0_8, %c0_9] : memref<1x8x256xf32, #tpu.memory_space<vmem>>, vector<1x8x256xf32>
    %12 = vector.shape_cast %10 : vector<1x8xf32> to vector<1x8x1xf32>
    %13 = vector.broadcast %12 : vector<1x8x1xf32> to vector<1x8x256xf32>
    %14 = arith.mulf %11, %13 : vector<1x8x256xf32>
    %cst_10 = arith.constant dense<0.000000e+00> : vector<1x256xf32>
    %15 = vector.multi_reduction <add>, %14, %cst_10 [1] : vector<1x8x256xf32> to vector<1x256xf32>
    %cst_11 = arith.constant 8.000000e+00 : f32
    %16 = vector.broadcast %cst_11 : f32 to vector<1x256xf32>
    %17 = arith.divf %15, %16 : vector<1x256xf32>
    %cst_12 = arith.constant dense<0xFF800000> : vector<1x256xf32>
    %18 = vector.multi_reduction <maximumf>, %14, %cst_12 [1] : vector<1x8x256xf32> to vector<1x256xf32>
    %c0_13 = arith.constant 0 : index
    %c0_14 = arith.constant 0 : index
    %19 = vector.load %arg3[%c0_13, %c0_14] : memref<14x256xf32, #tpu.memory_space<vmem>>, vector<14x256xf32>
    %20 = vector.extract_strided_slice %19 {offsets = [0, 0], sizes = [1, 256], strides = [1, 1]} : vector<14x256xf32> to vector<1x256xf32>
    %c3_i32 = arith.constant 3 : i32
    %21 = tpu.dynamic_rotate %17 by %c3_i32 dim 1 : vector<1x256xf32>, i32 -> vector<1x256xf32>
    %22 = arith.mulf %21, %20 : vector<1x256xf32>
    %c3_i32_15 = arith.constant 3 : i32
    %23 = tpu.dynamic_rotate %18 by %c3_i32_15 dim 1 : vector<1x256xf32>, i32 -> vector<1x256xf32>
    %24 = arith.mulf %23, %20 : vector<1x256xf32>
    %25 = vector.extract_strided_slice %19 {offsets = [1, 0], sizes = [1, 256], strides = [1, 1]} : vector<14x256xf32> to vector<1x256xf32>
    %c2_i32 = arith.constant 2 : i32
    %26 = tpu.dynamic_rotate %17 by %c2_i32 dim 1 : vector<1x256xf32>, i32 -> vector<1x256xf32>
    %27 = arith.mulf %26, %25 : vector<1x256xf32>
    %c2_i32_16 = arith.constant 2 : i32
    %28 = tpu.dynamic_rotate %18 by %c2_i32_16 dim 1 : vector<1x256xf32>, i32 -> vector<1x256xf32>
    %29 = arith.mulf %28, %25 : vector<1x256xf32>
    %30 = vector.extract_strided_slice %19 {offsets = [2, 0], sizes = [1, 256], strides = [1, 1]} : vector<14x256xf32> to vector<1x256xf32>
    %c1_i32 = arith.constant 1 : i32
    %31 = tpu.dynamic_rotate %17 by %c1_i32 dim 1 : vector<1x256xf32>, i32 -> vector<1x256xf32>
    %32 = arith.mulf %31, %30 : vector<1x256xf32>
    %c1_i32_17 = arith.constant 1 : i32
    %33 = tpu.dynamic_rotate %18 by %c1_i32_17 dim 1 : vector<1x256xf32>, i32 -> vector<1x256xf32>
    %34 = arith.mulf %33, %30 : vector<1x256xf32>
    %35 = vector.extract_strided_slice %19 {offsets = [4, 0], sizes = [1, 256], strides = [1, 1]} : vector<14x256xf32> to vector<1x256xf32>
    %c255_i32 = arith.constant 255 : i32
    %36 = tpu.dynamic_rotate %17 by %c255_i32 dim 1 : vector<1x256xf32>, i32 -> vector<1x256xf32>
    %37 = arith.mulf %36, %35 : vector<1x256xf32>
    %c255_i32_18 = arith.constant 255 : i32
    %38 = tpu.dynamic_rotate %18 by %c255_i32_18 dim 1 : vector<1x256xf32>, i32 -> vector<1x256xf32>
    %39 = arith.mulf %38, %35 : vector<1x256xf32>
    %40 = vector.extract_strided_slice %19 {offsets = [5, 0], sizes = [1, 256], strides = [1, 1]} : vector<14x256xf32> to vector<1x256xf32>
    %c254_i32 = arith.constant 254 : i32
    %41 = tpu.dynamic_rotate %17 by %c254_i32 dim 1 : vector<1x256xf32>, i32 -> vector<1x256xf32>
    %42 = arith.mulf %41, %40 : vector<1x256xf32>
    %c254_i32_19 = arith.constant 254 : i32
    %43 = tpu.dynamic_rotate %18 by %c254_i32_19 dim 1 : vector<1x256xf32>, i32 -> vector<1x256xf32>
    %44 = arith.mulf %43, %40 : vector<1x256xf32>
    %45 = vector.extract_strided_slice %19 {offsets = [6, 0], sizes = [1, 256], strides = [1, 1]} : vector<14x256xf32> to vector<1x256xf32>
    %c253_i32 = arith.constant 253 : i32
    %46 = tpu.dynamic_rotate %17 by %c253_i32 dim 1 : vector<1x256xf32>, i32 -> vector<1x256xf32>
    %47 = arith.mulf %46, %45 : vector<1x256xf32>
    %c253_i32_20 = arith.constant 253 : i32
    %48 = tpu.dynamic_rotate %18 by %c253_i32_20 dim 1 : vector<1x256xf32>, i32 -> vector<1x256xf32>
    %49 = arith.mulf %48, %45 : vector<1x256xf32>
    %cst_21 = arith.constant 0.000000e+00 : f32
    %50 = vector.broadcast %cst_21 : f32 to vector<1x256xf32>
    %cst_22 = arith.constant 0.000000e+00 : f32
    %51 = vector.broadcast %cst_22 : f32 to vector<1x256xf32>
    %c0_23 = arith.constant 0 : index
    %52 = memref.load %arg4[%c0_23] : memref<98xf32, #tpu.memory_space<smem>>
    %53 = vector.broadcast %52 : f32 to vector<1x256xf32>
    %54 = arith.mulf %53, %22 : vector<1x256xf32>
    %55 = arith.addf %51, %54 : vector<1x256xf32>
    %c49 = arith.constant 49 : index
    %56 = memref.load %arg4[%c49] : memref<98xf32, #tpu.memory_space<smem>>
    %57 = vector.broadcast %56 : f32 to vector<1x256xf32>
    %58 = arith.mulf %57, %24 : vector<1x256xf32>
    %59 = arith.addf %55, %58 : vector<1x256xf32>
    %c1 = arith.constant 1 : index
    %60 = memref.load %arg4[%c1] : memref<98xf32, #tpu.memory_space<smem>>
    %61 = vector.broadcast %60 : f32 to vector<1x256xf32>
    %62 = arith.mulf %61, %27 : vector<1x256xf32>
    %63 = arith.addf %59, %62 : vector<1x256xf32>
    %c50 = arith.constant 50 : index
    %64 = memref.load %arg4[%c50] : memref<98xf32, #tpu.memory_space<smem>>
    %65 = vector.broadcast %64 : f32 to vector<1x256xf32>
    %66 = arith.mulf %65, %29 : vector<1x256xf32>
    %67 = arith.addf %63, %66 : vector<1x256xf32>
    %c2 = arith.constant 2 : index
    %68 = memref.load %arg4[%c2] : memref<98xf32, #tpu.memory_space<smem>>
    %69 = vector.broadcast %68 : f32 to vector<1x256xf32>
    %70 = arith.mulf %69, %32 : vector<1x256xf32>
    %71 = arith.addf %67, %70 : vector<1x256xf32>
    %c51 = arith.constant 51 : index
    %72 = memref.load %arg4[%c51] : memref<98xf32, #tpu.memory_space<smem>>
    %73 = vector.broadcast %72 : f32 to vector<1x256xf32>
    %74 = arith.mulf %73, %34 : vector<1x256xf32>
    %75 = arith.addf %71, %74 : vector<1x256xf32>
    %c3 = arith.constant 3 : index
    %76 = memref.load %arg4[%c3] : memref<98xf32, #tpu.memory_space<smem>>
    %77 = vector.broadcast %76 : f32 to vector<1x256xf32>
    %78 = arith.mulf %77, %17 : vector<1x256xf32>
    %79 = arith.addf %75, %78 : vector<1x256xf32>
    %c52 = arith.constant 52 : index
    %80 = memref.load %arg4[%c52] : memref<98xf32, #tpu.memory_space<smem>>
    %81 = vector.broadcast %80 : f32 to vector<1x256xf32>
    %82 = arith.mulf %81, %18 : vector<1x256xf32>
    %83 = arith.addf %79, %82 : vector<1x256xf32>
    %c4 = arith.constant 4 : index
    %84 = memref.load %arg4[%c4] : memref<98xf32, #tpu.memory_space<smem>>
    %85 = vector.broadcast %84 : f32 to vector<1x256xf32>
    %86 = arith.mulf %85, %37 : vector<1x256xf32>
    %87 = arith.addf %83, %86 : vector<1x256xf32>
    %c53 = arith.constant 53 : index
    %88 = memref.load %arg4[%c53] : memref<98xf32, #tpu.memory_space<smem>>
    %89 = vector.broadcast %88 : f32 to vector<1x256xf32>
    %90 = arith.mulf %89, %39 : vector<1x256xf32>
    %91 = arith.addf %87, %90 : vector<1x256xf32>
    %c5 = arith.constant 5 : index
    %92 = memref.load %arg4[%c5] : memref<98xf32, #tpu.memory_space<smem>>
    %93 = vector.broadcast %92 : f32 to vector<1x256xf32>
    %94 = arith.mulf %93, %42 : vector<1x256xf32>
    %95 = arith.addf %91, %94 : vector<1x256xf32>
    %c54 = arith.constant 54 : index
    %96 = memref.load %arg4[%c54] : memref<98xf32, #tpu.memory_space<smem>>
    %97 = vector.broadcast %96 : f32 to vector<1x256xf32>
    %98 = arith.mulf %97, %44 : vector<1x256xf32>
    %99 = arith.addf %95, %98 : vector<1x256xf32>
    %c6 = arith.constant 6 : index
    %100 = memref.load %arg4[%c6] : memref<98xf32, #tpu.memory_space<smem>>
    %101 = vector.broadcast %100 : f32 to vector<1x256xf32>
    %102 = arith.mulf %101, %47 : vector<1x256xf32>
    %103 = arith.addf %99, %102 : vector<1x256xf32>
    %c55 = arith.constant 55 : index
    %104 = memref.load %arg4[%c55] : memref<98xf32, #tpu.memory_space<smem>>
    %105 = vector.broadcast %104 : f32 to vector<1x256xf32>
    %106 = arith.mulf %105, %49 : vector<1x256xf32>
    %107 = arith.addf %103, %106 : vector<1x256xf32>
    %108 = vector.extract_strided_slice %19 {offsets = [7, 0], sizes = [1, 256], strides = [1, 1]} : vector<14x256xf32> to vector<1x256xf32>
    %c48_i32 = arith.constant 48 : i32
    %109 = tpu.dynamic_rotate %107 by %c48_i32 dim 1 : vector<1x256xf32>, i32 -> vector<1x256xf32>
    %110 = arith.mulf %109, %108 : vector<1x256xf32>
    %111 = arith.addf %50, %110 : vector<1x256xf32>
    %cst_24 = arith.constant 0.000000e+00 : f32
    %112 = vector.broadcast %cst_24 : f32 to vector<1x256xf32>
    %c7 = arith.constant 7 : index
    %113 = memref.load %arg4[%c7] : memref<98xf32, #tpu.memory_space<smem>>
    %114 = vector.broadcast %113 : f32 to vector<1x256xf32>
    %115 = arith.mulf %114, %22 : vector<1x256xf32>
    %116 = arith.addf %112, %115 : vector<1x256xf32>
    %c56 = arith.constant 56 : index
    %117 = memref.load %arg4[%c56] : memref<98xf32, #tpu.memory_space<smem>>
    %118 = vector.broadcast %117 : f32 to vector<1x256xf32>
    %119 = arith.mulf %118, %24 : vector<1x256xf32>
    %120 = arith.addf %116, %119 : vector<1x256xf32>
    %c8 = arith.constant 8 : index
    %121 = memref.load %arg4[%c8] : memref<98xf32, #tpu.memory_space<smem>>
    %122 = vector.broadcast %121 : f32 to vector<1x256xf32>
    %123 = arith.mulf %122, %27 : vector<1x256xf32>
    %124 = arith.addf %120, %123 : vector<1x256xf32>
    %c57 = arith.constant 57 : index
    %125 = memref.load %arg4[%c57] : memref<98xf32, #tpu.memory_space<smem>>
    %126 = vector.broadcast %125 : f32 to vector<1x256xf32>
    %127 = arith.mulf %126, %29 : vector<1x256xf32>
    %128 = arith.addf %124, %127 : vector<1x256xf32>
    %c9 = arith.constant 9 : index
    %129 = memref.load %arg4[%c9] : memref<98xf32, #tpu.memory_space<smem>>
    %130 = vector.broadcast %129 : f32 to vector<1x256xf32>
    %131 = arith.mulf %130, %32 : vector<1x256xf32>
    %132 = arith.addf %128, %131 : vector<1x256xf32>
    %c58 = arith.constant 58 : index
    %133 = memref.load %arg4[%c58] : memref<98xf32, #tpu.memory_space<smem>>
    %134 = vector.broadcast %133 : f32 to vector<1x256xf32>
    %135 = arith.mulf %134, %34 : vector<1x256xf32>
    %136 = arith.addf %132, %135 : vector<1x256xf32>
    %c10 = arith.constant 10 : index
    %137 = memref.load %arg4[%c10] : memref<98xf32, #tpu.memory_space<smem>>
    %138 = vector.broadcast %137 : f32 to vector<1x256xf32>
    %139 = arith.mulf %138, %17 : vector<1x256xf32>
    %140 = arith.addf %136, %139 : vector<1x256xf32>
    %c59 = arith.constant 59 : index
    %141 = memref.load %arg4[%c59] : memref<98xf32, #tpu.memory_space<smem>>
    %142 = vector.broadcast %141 : f32 to vector<1x256xf32>
    %143 = arith.mulf %142, %18 : vector<1x256xf32>
    %144 = arith.addf %140, %143 : vector<1x256xf32>
    %c11 = arith.constant 11 : index
    %145 = memref.load %arg4[%c11] : memref<98xf32, #tpu.memory_space<smem>>
    %146 = vector.broadcast %145 : f32 to vector<1x256xf32>
    %147 = arith.mulf %146, %37 : vector<1x256xf32>
    %148 = arith.addf %144, %147 : vector<1x256xf32>
    %c60 = arith.constant 60 : index
    %149 = memref.load %arg4[%c60] : memref<98xf32, #tpu.memory_space<smem>>
    %150 = vector.broadcast %149 : f32 to vector<1x256xf32>
    %151 = arith.mulf %150, %39 : vector<1x256xf32>
    %152 = arith.addf %148, %151 : vector<1x256xf32>
    %c12 = arith.constant 12 : index
    %153 = memref.load %arg4[%c12] : memref<98xf32, #tpu.memory_space<smem>>
    %154 = vector.broadcast %153 : f32 to vector<1x256xf32>
    %155 = arith.mulf %154, %42 : vector<1x256xf32>
    %156 = arith.addf %152, %155 : vector<1x256xf32>
    %c61 = arith.constant 61 : index
    %157 = memref.load %arg4[%c61] : memref<98xf32, #tpu.memory_space<smem>>
    %158 = vector.broadcast %157 : f32 to vector<1x256xf32>
    %159 = arith.mulf %158, %44 : vector<1x256xf32>
    %160 = arith.addf %156, %159 : vector<1x256xf32>
    %c13 = arith.constant 13 : index
    %161 = memref.load %arg4[%c13] : memref<98xf32, #tpu.memory_space<smem>>
    %162 = vector.broadcast %161 : f32 to vector<1x256xf32>
    %163 = arith.mulf %162, %47 : vector<1x256xf32>
    %164 = arith.addf %160, %163 : vector<1x256xf32>
    %c62 = arith.constant 62 : index
    %165 = memref.load %arg4[%c62] : memref<98xf32, #tpu.memory_space<smem>>
    %166 = vector.broadcast %165 : f32 to vector<1x256xf32>
    %167 = arith.mulf %166, %49 : vector<1x256xf32>
    %168 = arith.addf %164, %167 : vector<1x256xf32>
    %169 = vector.extract_strided_slice %19 {offsets = [8, 0], sizes = [1, 256], strides = [1, 1]} : vector<14x256xf32> to vector<1x256xf32>
    %c32_i32 = arith.constant 32 : i32
    %170 = tpu.dynamic_rotate %168 by %c32_i32 dim 1 : vector<1x256xf32>, i32 -> vector<1x256xf32>
    %171 = arith.mulf %170, %169 : vector<1x256xf32>
    %172 = arith.addf %111, %171 : vector<1x256xf32>
    %cst_25 = arith.constant 0.000000e+00 : f32
    %173 = vector.broadcast %cst_25 : f32 to vector<1x256xf32>
    %c14 = arith.constant 14 : index
    %174 = memref.load %arg4[%c14] : memref<98xf32, #tpu.memory_space<smem>>
    %175 = vector.broadcast %174 : f32 to vector<1x256xf32>
    %176 = arith.mulf %175, %22 : vector<1x256xf32>
    %177 = arith.addf %173, %176 : vector<1x256xf32>
    %c63 = arith.constant 63 : index
    %178 = memref.load %arg4[%c63] : memref<98xf32, #tpu.memory_space<smem>>
    %179 = vector.broadcast %178 : f32 to vector<1x256xf32>
    %180 = arith.mulf %179, %24 : vector<1x256xf32>
    %181 = arith.addf %177, %180 : vector<1x256xf32>
    %c15 = arith.constant 15 : index
    %182 = memref.load %arg4[%c15] : memref<98xf32, #tpu.memory_space<smem>>
    %183 = vector.broadcast %182 : f32 to vector<1x256xf32>
    %184 = arith.mulf %183, %27 : vector<1x256xf32>
    %185 = arith.addf %181, %184 : vector<1x256xf32>
    %c64 = arith.constant 64 : index
    %186 = memref.load %arg4[%c64] : memref<98xf32, #tpu.memory_space<smem>>
    %187 = vector.broadcast %186 : f32 to vector<1x256xf32>
    %188 = arith.mulf %187, %29 : vector<1x256xf32>
    %189 = arith.addf %185, %188 : vector<1x256xf32>
    %c16 = arith.constant 16 : index
    %190 = memref.load %arg4[%c16] : memref<98xf32, #tpu.memory_space<smem>>
    %191 = vector.broadcast %190 : f32 to vector<1x256xf32>
    %192 = arith.mulf %191, %32 : vector<1x256xf32>
    %193 = arith.addf %189, %192 : vector<1x256xf32>
    %c65 = arith.constant 65 : index
    %194 = memref.load %arg4[%c65] : memref<98xf32, #tpu.memory_space<smem>>
    %195 = vector.broadcast %194 : f32 to vector<1x256xf32>
    %196 = arith.mulf %195, %34 : vector<1x256xf32>
    %197 = arith.addf %193, %196 : vector<1x256xf32>
    %c17 = arith.constant 17 : index
    %198 = memref.load %arg4[%c17] : memref<98xf32, #tpu.memory_space<smem>>
    %199 = vector.broadcast %198 : f32 to vector<1x256xf32>
    %200 = arith.mulf %199, %17 : vector<1x256xf32>
    %201 = arith.addf %197, %200 : vector<1x256xf32>
    %c66 = arith.constant 66 : index
    %202 = memref.load %arg4[%c66] : memref<98xf32, #tpu.memory_space<smem>>
    %203 = vector.broadcast %202 : f32 to vector<1x256xf32>
    %204 = arith.mulf %203, %18 : vector<1x256xf32>
    %205 = arith.addf %201, %204 : vector<1x256xf32>
    %c18 = arith.constant 18 : index
    %206 = memref.load %arg4[%c18] : memref<98xf32, #tpu.memory_space<smem>>
    %207 = vector.broadcast %206 : f32 to vector<1x256xf32>
    %208 = arith.mulf %207, %37 : vector<1x256xf32>
    %209 = arith.addf %205, %208 : vector<1x256xf32>
    %c67 = arith.constant 67 : index
    %210 = memref.load %arg4[%c67] : memref<98xf32, #tpu.memory_space<smem>>
    %211 = vector.broadcast %210 : f32 to vector<1x256xf32>
    %212 = arith.mulf %211, %39 : vector<1x256xf32>
    %213 = arith.addf %209, %212 : vector<1x256xf32>
    %c19 = arith.constant 19 : index
    %214 = memref.load %arg4[%c19] : memref<98xf32, #tpu.memory_space<smem>>
    %215 = vector.broadcast %214 : f32 to vector<1x256xf32>
    %216 = arith.mulf %215, %42 : vector<1x256xf32>
    %217 = arith.addf %213, %216 : vector<1x256xf32>
    %c68 = arith.constant 68 : index
    %218 = memref.load %arg4[%c68] : memref<98xf32, #tpu.memory_space<smem>>
    %219 = vector.broadcast %218 : f32 to vector<1x256xf32>
    %220 = arith.mulf %219, %44 : vector<1x256xf32>
    %221 = arith.addf %217, %220 : vector<1x256xf32>
    %c20 = arith.constant 20 : index
    %222 = memref.load %arg4[%c20] : memref<98xf32, #tpu.memory_space<smem>>
    %223 = vector.broadcast %222 : f32 to vector<1x256xf32>
    %224 = arith.mulf %223, %47 : vector<1x256xf32>
    %225 = arith.addf %221, %224 : vector<1x256xf32>
    %c69 = arith.constant 69 : index
    %226 = memref.load %arg4[%c69] : memref<98xf32, #tpu.memory_space<smem>>
    %227 = vector.broadcast %226 : f32 to vector<1x256xf32>
    %228 = arith.mulf %227, %49 : vector<1x256xf32>
    %229 = arith.addf %225, %228 : vector<1x256xf32>
    %230 = vector.extract_strided_slice %19 {offsets = [9, 0], sizes = [1, 256], strides = [1, 1]} : vector<14x256xf32> to vector<1x256xf32>
    %c16_i32 = arith.constant 16 : i32
    %231 = tpu.dynamic_rotate %229 by %c16_i32 dim 1 : vector<1x256xf32>, i32 -> vector<1x256xf32>
    %232 = arith.mulf %231, %230 : vector<1x256xf32>
    %233 = arith.addf %172, %232 : vector<1x256xf32>
    %cst_26 = arith.constant 0.000000e+00 : f32
    %234 = vector.broadcast %cst_26 : f32 to vector<1x256xf32>
    %c21 = arith.constant 21 : index
    %235 = memref.load %arg4[%c21] : memref<98xf32, #tpu.memory_space<smem>>
    %236 = vector.broadcast %235 : f32 to vector<1x256xf32>
    %237 = arith.mulf %236, %22 : vector<1x256xf32>
    %238 = arith.addf %234, %237 : vector<1x256xf32>
    %c70 = arith.constant 70 : index
    %239 = memref.load %arg4[%c70] : memref<98xf32, #tpu.memory_space<smem>>
    %240 = vector.broadcast %239 : f32 to vector<1x256xf32>
    %241 = arith.mulf %240, %24 : vector<1x256xf32>
    %242 = arith.addf %238, %241 : vector<1x256xf32>
    %c22 = arith.constant 22 : index
    %243 = memref.load %arg4[%c22] : memref<98xf32, #tpu.memory_space<smem>>
    %244 = vector.broadcast %243 : f32 to vector<1x256xf32>
    %245 = arith.mulf %244, %27 : vector<1x256xf32>
    %246 = arith.addf %242, %245 : vector<1x256xf32>
    %c71 = arith.constant 71 : index
    %247 = memref.load %arg4[%c71] : memref<98xf32, #tpu.memory_space<smem>>
    %248 = vector.broadcast %247 : f32 to vector<1x256xf32>
    %249 = arith.mulf %248, %29 : vector<1x256xf32>
    %250 = arith.addf %246, %249 : vector<1x256xf32>
    %c23 = arith.constant 23 : index
    %251 = memref.load %arg4[%c23] : memref<98xf32, #tpu.memory_space<smem>>
    %252 = vector.broadcast %251 : f32 to vector<1x256xf32>
    %253 = arith.mulf %252, %32 : vector<1x256xf32>
    %254 = arith.addf %250, %253 : vector<1x256xf32>
    %c72 = arith.constant 72 : index
    %255 = memref.load %arg4[%c72] : memref<98xf32, #tpu.memory_space<smem>>
    %256 = vector.broadcast %255 : f32 to vector<1x256xf32>
    %257 = arith.mulf %256, %34 : vector<1x256xf32>
    %258 = arith.addf %254, %257 : vector<1x256xf32>
    %c24 = arith.constant 24 : index
    %259 = memref.load %arg4[%c24] : memref<98xf32, #tpu.memory_space<smem>>
    %260 = vector.broadcast %259 : f32 to vector<1x256xf32>
    %261 = arith.mulf %260, %17 : vector<1x256xf32>
    %262 = arith.addf %258, %261 : vector<1x256xf32>
    %c73 = arith.constant 73 : index
    %263 = memref.load %arg4[%c73] : memref<98xf32, #tpu.memory_space<smem>>
    %264 = vector.broadcast %263 : f32 to vector<1x256xf32>
    %265 = arith.mulf %264, %18 : vector<1x256xf32>
    %266 = arith.addf %262, %265 : vector<1x256xf32>
    %c25 = arith.constant 25 : index
    %267 = memref.load %arg4[%c25] : memref<98xf32, #tpu.memory_space<smem>>
    %268 = vector.broadcast %267 : f32 to vector<1x256xf32>
    %269 = arith.mulf %268, %37 : vector<1x256xf32>
    %270 = arith.addf %266, %269 : vector<1x256xf32>
    %c74 = arith.constant 74 : index
    %271 = memref.load %arg4[%c74] : memref<98xf32, #tpu.memory_space<smem>>
    %272 = vector.broadcast %271 : f32 to vector<1x256xf32>
    %273 = arith.mulf %272, %39 : vector<1x256xf32>
    %274 = arith.addf %270, %273 : vector<1x256xf32>
    %c26 = arith.constant 26 : index
    %275 = memref.load %arg4[%c26] : memref<98xf32, #tpu.memory_space<smem>>
    %276 = vector.broadcast %275 : f32 to vector<1x256xf32>
    %277 = arith.mulf %276, %42 : vector<1x256xf32>
    %278 = arith.addf %274, %277 : vector<1x256xf32>
    %c75 = arith.constant 75 : index
    %279 = memref.load %arg4[%c75] : memref<98xf32, #tpu.memory_space<smem>>
    %280 = vector.broadcast %279 : f32 to vector<1x256xf32>
    %281 = arith.mulf %280, %44 : vector<1x256xf32>
    %282 = arith.addf %278, %281 : vector<1x256xf32>
    %c27 = arith.constant 27 : index
    %283 = memref.load %arg4[%c27] : memref<98xf32, #tpu.memory_space<smem>>
    %284 = vector.broadcast %283 : f32 to vector<1x256xf32>
    %285 = arith.mulf %284, %47 : vector<1x256xf32>
    %286 = arith.addf %282, %285 : vector<1x256xf32>
    %c76 = arith.constant 76 : index
    %287 = memref.load %arg4[%c76] : memref<98xf32, #tpu.memory_space<smem>>
    %288 = vector.broadcast %287 : f32 to vector<1x256xf32>
    %289 = arith.mulf %288, %49 : vector<1x256xf32>
    %290 = arith.addf %286, %289 : vector<1x256xf32>
    %291 = arith.addf %233, %290 : vector<1x256xf32>
    %cst_27 = arith.constant 0.000000e+00 : f32
    %292 = vector.broadcast %cst_27 : f32 to vector<1x256xf32>
    %c28 = arith.constant 28 : index
    %293 = memref.load %arg4[%c28] : memref<98xf32, #tpu.memory_space<smem>>
    %294 = vector.broadcast %293 : f32 to vector<1x256xf32>
    %295 = arith.mulf %294, %22 : vector<1x256xf32>
    %296 = arith.addf %292, %295 : vector<1x256xf32>
    %c77 = arith.constant 77 : index
    %297 = memref.load %arg4[%c77] : memref<98xf32, #tpu.memory_space<smem>>
    %298 = vector.broadcast %297 : f32 to vector<1x256xf32>
    %299 = arith.mulf %298, %24 : vector<1x256xf32>
    %300 = arith.addf %296, %299 : vector<1x256xf32>
    %c29 = arith.constant 29 : index
    %301 = memref.load %arg4[%c29] : memref<98xf32, #tpu.memory_space<smem>>
    %302 = vector.broadcast %301 : f32 to vector<1x256xf32>
    %303 = arith.mulf %302, %27 : vector<1x256xf32>
    %304 = arith.addf %300, %303 : vector<1x256xf32>
    %c78 = arith.constant 78 : index
    %305 = memref.load %arg4[%c78] : memref<98xf32, #tpu.memory_space<smem>>
    %306 = vector.broadcast %305 : f32 to vector<1x256xf32>
    %307 = arith.mulf %306, %29 : vector<1x256xf32>
    %308 = arith.addf %304, %307 : vector<1x256xf32>
    %c30 = arith.constant 30 : index
    %309 = memref.load %arg4[%c30] : memref<98xf32, #tpu.memory_space<smem>>
    %310 = vector.broadcast %309 : f32 to vector<1x256xf32>
    %311 = arith.mulf %310, %32 : vector<1x256xf32>
    %312 = arith.addf %308, %311 : vector<1x256xf32>
    %c79 = arith.constant 79 : index
    %313 = memref.load %arg4[%c79] : memref<98xf32, #tpu.memory_space<smem>>
    %314 = vector.broadcast %313 : f32 to vector<1x256xf32>
    %315 = arith.mulf %314, %34 : vector<1x256xf32>
    %316 = arith.addf %312, %315 : vector<1x256xf32>
    %c31 = arith.constant 31 : index
    %317 = memref.load %arg4[%c31] : memref<98xf32, #tpu.memory_space<smem>>
    %318 = vector.broadcast %317 : f32 to vector<1x256xf32>
    %319 = arith.mulf %318, %17 : vector<1x256xf32>
    %320 = arith.addf %316, %319 : vector<1x256xf32>
    %c80 = arith.constant 80 : index
    %321 = memref.load %arg4[%c80] : memref<98xf32, #tpu.memory_space<smem>>
    %322 = vector.broadcast %321 : f32 to vector<1x256xf32>
    %323 = arith.mulf %322, %18 : vector<1x256xf32>
    %324 = arith.addf %320, %323 : vector<1x256xf32>
    %c32 = arith.constant 32 : index
    %325 = memref.load %arg4[%c32] : memref<98xf32, #tpu.memory_space<smem>>
    %326 = vector.broadcast %325 : f32 to vector<1x256xf32>
    %327 = arith.mulf %326, %37 : vector<1x256xf32>
    %328 = arith.addf %324, %327 : vector<1x256xf32>
    %c81 = arith.constant 81 : index
    %329 = memref.load %arg4[%c81] : memref<98xf32, #tpu.memory_space<smem>>
    %330 = vector.broadcast %329 : f32 to vector<1x256xf32>
    %331 = arith.mulf %330, %39 : vector<1x256xf32>
    %332 = arith.addf %328, %331 : vector<1x256xf32>
    %c33 = arith.constant 33 : index
    %333 = memref.load %arg4[%c33] : memref<98xf32, #tpu.memory_space<smem>>
    %334 = vector.broadcast %333 : f32 to vector<1x256xf32>
    %335 = arith.mulf %334, %42 : vector<1x256xf32>
    %336 = arith.addf %332, %335 : vector<1x256xf32>
    %c82 = arith.constant 82 : index
    %337 = memref.load %arg4[%c82] : memref<98xf32, #tpu.memory_space<smem>>
    %338 = vector.broadcast %337 : f32 to vector<1x256xf32>
    %339 = arith.mulf %338, %44 : vector<1x256xf32>
    %340 = arith.addf %336, %339 : vector<1x256xf32>
    %c34 = arith.constant 34 : index
    %341 = memref.load %arg4[%c34] : memref<98xf32, #tpu.memory_space<smem>>
    %342 = vector.broadcast %341 : f32 to vector<1x256xf32>
    %343 = arith.mulf %342, %47 : vector<1x256xf32>
    %344 = arith.addf %340, %343 : vector<1x256xf32>
    %c83 = arith.constant 83 : index
    %345 = memref.load %arg4[%c83] : memref<98xf32, #tpu.memory_space<smem>>
    %346 = vector.broadcast %345 : f32 to vector<1x256xf32>
    %347 = arith.mulf %346, %49 : vector<1x256xf32>
    %348 = arith.addf %344, %347 : vector<1x256xf32>
    %349 = vector.extract_strided_slice %19 {offsets = [11, 0], sizes = [1, 256], strides = [1, 1]} : vector<14x256xf32> to vector<1x256xf32>
    %c240_i32 = arith.constant 240 : i32
    %350 = tpu.dynamic_rotate %348 by %c240_i32 dim 1 : vector<1x256xf32>, i32 -> vector<1x256xf32>
    %351 = arith.mulf %350, %349 : vector<1x256xf32>
    %352 = arith.addf %291, %351 : vector<1x256xf32>
    %cst_28 = arith.constant 0.000000e+00 : f32
    %353 = vector.broadcast %cst_28 : f32 to vector<1x256xf32>
    %c35 = arith.constant 35 : index
    %354 = memref.load %arg4[%c35] : memref<98xf32, #tpu.memory_space<smem>>
    %355 = vector.broadcast %354 : f32 to vector<1x256xf32>
    %356 = arith.mulf %355, %22 : vector<1x256xf32>
    %357 = arith.addf %353, %356 : vector<1x256xf32>
    %c84 = arith.constant 84 : index
    %358 = memref.load %arg4[%c84] : memref<98xf32, #tpu.memory_space<smem>>
    %359 = vector.broadcast %358 : f32 to vector<1x256xf32>
    %360 = arith.mulf %359, %24 : vector<1x256xf32>
    %361 = arith.addf %357, %360 : vector<1x256xf32>
    %c36 = arith.constant 36 : index
    %362 = memref.load %arg4[%c36] : memref<98xf32, #tpu.memory_space<smem>>
    %363 = vector.broadcast %362 : f32 to vector<1x256xf32>
    %364 = arith.mulf %363, %27 : vector<1x256xf32>
    %365 = arith.addf %361, %364 : vector<1x256xf32>
    %c85 = arith.constant 85 : index
    %366 = memref.load %arg4[%c85] : memref<98xf32, #tpu.memory_space<smem>>
    %367 = vector.broadcast %366 : f32 to vector<1x256xf32>
    %368 = arith.mulf %367, %29 : vector<1x256xf32>
    %369 = arith.addf %365, %368 : vector<1x256xf32>
    %c37 = arith.constant 37 : index
    %370 = memref.load %arg4[%c37] : memref<98xf32, #tpu.memory_space<smem>>
    %371 = vector.broadcast %370 : f32 to vector<1x256xf32>
    %372 = arith.mulf %371, %32 : vector<1x256xf32>
    %373 = arith.addf %369, %372 : vector<1x256xf32>
    %c86 = arith.constant 86 : index
    %374 = memref.load %arg4[%c86] : memref<98xf32, #tpu.memory_space<smem>>
    %375 = vector.broadcast %374 : f32 to vector<1x256xf32>
    %376 = arith.mulf %375, %34 : vector<1x256xf32>
    %377 = arith.addf %373, %376 : vector<1x256xf32>
    %c38 = arith.constant 38 : index
    %378 = memref.load %arg4[%c38] : memref<98xf32, #tpu.memory_space<smem>>
    %379 = vector.broadcast %378 : f32 to vector<1x256xf32>
    %380 = arith.mulf %379, %17 : vector<1x256xf32>
    %381 = arith.addf %377, %380 : vector<1x256xf32>
    %c87 = arith.constant 87 : index
    %382 = memref.load %arg4[%c87] : memref<98xf32, #tpu.memory_space<smem>>
    %383 = vector.broadcast %382 : f32 to vector<1x256xf32>
    %384 = arith.mulf %383, %18 : vector<1x256xf32>
    %385 = arith.addf %381, %384 : vector<1x256xf32>
    %c39 = arith.constant 39 : index
    %386 = memref.load %arg4[%c39] : memref<98xf32, #tpu.memory_space<smem>>
    %387 = vector.broadcast %386 : f32 to vector<1x256xf32>
    %388 = arith.mulf %387, %37 : vector<1x256xf32>
    %389 = arith.addf %385, %388 : vector<1x256xf32>
    %c88 = arith.constant 88 : index
    %390 = memref.load %arg4[%c88] : memref<98xf32, #tpu.memory_space<smem>>
    %391 = vector.broadcast %390 : f32 to vector<1x256xf32>
    %392 = arith.mulf %391, %39 : vector<1x256xf32>
    %393 = arith.addf %389, %392 : vector<1x256xf32>
    %c40 = arith.constant 40 : index
    %394 = memref.load %arg4[%c40] : memref<98xf32, #tpu.memory_space<smem>>
    %395 = vector.broadcast %394 : f32 to vector<1x256xf32>
    %396 = arith.mulf %395, %42 : vector<1x256xf32>
    %397 = arith.addf %393, %396 : vector<1x256xf32>
    %c89 = arith.constant 89 : index
    %398 = memref.load %arg4[%c89] : memref<98xf32, #tpu.memory_space<smem>>
    %399 = vector.broadcast %398 : f32 to vector<1x256xf32>
    %400 = arith.mulf %399, %44 : vector<1x256xf32>
    %401 = arith.addf %397, %400 : vector<1x256xf32>
    %c41 = arith.constant 41 : index
    %402 = memref.load %arg4[%c41] : memref<98xf32, #tpu.memory_space<smem>>
    %403 = vector.broadcast %402 : f32 to vector<1x256xf32>
    %404 = arith.mulf %403, %47 : vector<1x256xf32>
    %405 = arith.addf %401, %404 : vector<1x256xf32>
    %c90 = arith.constant 90 : index
    %406 = memref.load %arg4[%c90] : memref<98xf32, #tpu.memory_space<smem>>
    %407 = vector.broadcast %406 : f32 to vector<1x256xf32>
    %408 = arith.mulf %407, %49 : vector<1x256xf32>
    %409 = arith.addf %405, %408 : vector<1x256xf32>
    %410 = vector.extract_strided_slice %19 {offsets = [12, 0], sizes = [1, 256], strides = [1, 1]} : vector<14x256xf32> to vector<1x256xf32>
    %c224_i32 = arith.constant 224 : i32
    %411 = tpu.dynamic_rotate %409 by %c224_i32 dim 1 : vector<1x256xf32>, i32 -> vector<1x256xf32>
    %412 = arith.mulf %411, %410 : vector<1x256xf32>
    %413 = arith.addf %352, %412 : vector<1x256xf32>
    %cst_29 = arith.constant 0.000000e+00 : f32
    %414 = vector.broadcast %cst_29 : f32 to vector<1x256xf32>
    %c42 = arith.constant 42 : index
    %415 = memref.load %arg4[%c42] : memref<98xf32, #tpu.memory_space<smem>>
    %416 = vector.broadcast %415 : f32 to vector<1x256xf32>
    %417 = arith.mulf %416, %22 : vector<1x256xf32>
    %418 = arith.addf %414, %417 : vector<1x256xf32>
    %c91 = arith.constant 91 : index
    %419 = memref.load %arg4[%c91] : memref<98xf32, #tpu.memory_space<smem>>
    %420 = vector.broadcast %419 : f32 to vector<1x256xf32>
    %421 = arith.mulf %420, %24 : vector<1x256xf32>
    %422 = arith.addf %418, %421 : vector<1x256xf32>
    %c43 = arith.constant 43 : index
    %423 = memref.load %arg4[%c43] : memref<98xf32, #tpu.memory_space<smem>>
    %424 = vector.broadcast %423 : f32 to vector<1x256xf32>
    %425 = arith.mulf %424, %27 : vector<1x256xf32>
    %426 = arith.addf %422, %425 : vector<1x256xf32>
    %c92 = arith.constant 92 : index
    %427 = memref.load %arg4[%c92] : memref<98xf32, #tpu.memory_space<smem>>
    %428 = vector.broadcast %427 : f32 to vector<1x256xf32>
    %429 = arith.mulf %428, %29 : vector<1x256xf32>
    %430 = arith.addf %426, %429 : vector<1x256xf32>
    %c44 = arith.constant 44 : index
    %431 = memref.load %arg4[%c44] : memref<98xf32, #tpu.memory_space<smem>>
    %432 = vector.broadcast %431 : f32 to vector<1x256xf32>
    %433 = arith.mulf %432, %32 : vector<1x256xf32>
    %434 = arith.addf %430, %433 : vector<1x256xf32>
    %c93 = arith.constant 93 : index
    %435 = memref.load %arg4[%c93] : memref<98xf32, #tpu.memory_space<smem>>
    %436 = vector.broadcast %435 : f32 to vector<1x256xf32>
    %437 = arith.mulf %436, %34 : vector<1x256xf32>
    %438 = arith.addf %434, %437 : vector<1x256xf32>
    %c45 = arith.constant 45 : index
    %439 = memref.load %arg4[%c45] : memref<98xf32, #tpu.memory_space<smem>>
    %440 = vector.broadcast %439 : f32 to vector<1x256xf32>
    %441 = arith.mulf %440, %17 : vector<1x256xf32>
    %442 = arith.addf %438, %441 : vector<1x256xf32>
    %c94 = arith.constant 94 : index
    %443 = memref.load %arg4[%c94] : memref<98xf32, #tpu.memory_space<smem>>
    %444 = vector.broadcast %443 : f32 to vector<1x256xf32>
    %445 = arith.mulf %444, %18 : vector<1x256xf32>
    %446 = arith.addf %442, %445 : vector<1x256xf32>
    %c46 = arith.constant 46 : index
    %447 = memref.load %arg4[%c46] : memref<98xf32, #tpu.memory_space<smem>>
    %448 = vector.broadcast %447 : f32 to vector<1x256xf32>
    %449 = arith.mulf %448, %37 : vector<1x256xf32>
    %450 = arith.addf %446, %449 : vector<1x256xf32>
    %c95 = arith.constant 95 : index
    %451 = memref.load %arg4[%c95] : memref<98xf32, #tpu.memory_space<smem>>
    %452 = vector.broadcast %451 : f32 to vector<1x256xf32>
    %453 = arith.mulf %452, %39 : vector<1x256xf32>
    %454 = arith.addf %450, %453 : vector<1x256xf32>
    %c47 = arith.constant 47 : index
    %455 = memref.load %arg4[%c47] : memref<98xf32, #tpu.memory_space<smem>>
    %456 = vector.broadcast %455 : f32 to vector<1x256xf32>
    %457 = arith.mulf %456, %42 : vector<1x256xf32>
    %458 = arith.addf %454, %457 : vector<1x256xf32>
    %c96 = arith.constant 96 : index
    %459 = memref.load %arg4[%c96] : memref<98xf32, #tpu.memory_space<smem>>
    %460 = vector.broadcast %459 : f32 to vector<1x256xf32>
    %461 = arith.mulf %460, %44 : vector<1x256xf32>
    %462 = arith.addf %458, %461 : vector<1x256xf32>
    %c48 = arith.constant 48 : index
    %463 = memref.load %arg4[%c48] : memref<98xf32, #tpu.memory_space<smem>>
    %464 = vector.broadcast %463 : f32 to vector<1x256xf32>
    %465 = arith.mulf %464, %47 : vector<1x256xf32>
    %466 = arith.addf %462, %465 : vector<1x256xf32>
    %c97 = arith.constant 97 : index
    %467 = memref.load %arg4[%c97] : memref<98xf32, #tpu.memory_space<smem>>
    %468 = vector.broadcast %467 : f32 to vector<1x256xf32>
    %469 = arith.mulf %468, %49 : vector<1x256xf32>
    %470 = arith.addf %466, %469 : vector<1x256xf32>
    %471 = vector.extract_strided_slice %19 {offsets = [13, 0], sizes = [1, 256], strides = [1, 1]} : vector<14x256xf32> to vector<1x256xf32>
    %c208_i32 = arith.constant 208 : i32
    %472 = tpu.dynamic_rotate %470 by %c208_i32 dim 1 : vector<1x256xf32>, i32 -> vector<1x256xf32>
    %473 = arith.mulf %472, %471 : vector<1x256xf32>
    %474 = arith.addf %413, %473 : vector<1x256xf32>
    %475 = arith.negf %474 : vector<1x256xf32>
    %476 = math.exp %475 : vector<1x256xf32>
    %cst_30 = arith.constant 1.000000e+00 : f32
    %477 = vector.broadcast %cst_30 : f32 to vector<1x256xf32>
    %478 = arith.addf %477, %476 : vector<1x256xf32>
    %479 = arith.divf %477, %478 : vector<1x256xf32>
    %480 = vector.shape_cast %479 : vector<1x256xf32> to vector<1x1x256xf32>
    %481 = vector.broadcast %480 : vector<1x1x256xf32> to vector<1x8x256xf32>
    %482 = arith.mulf %14, %481 : vector<1x8x256xf32>
    %c0_31 = arith.constant 0 : index
    %c0_32 = arith.constant 0 : index
    %c0_33 = arith.constant 0 : index
    %483 = vector.load %arg5[%c0_31, %c0_32, %c0_33] : memref<1x8x256xf32, #tpu.memory_space<vmem>>, vector<1x8x256xf32>
    tpu.vector_store %arg5[%c0_31, %c0_32, %c0_33], %482 {strides = array<i32>} : memref<1x8x256xf32, #tpu.memory_space<vmem>>, vector<1x8x256xf32>,
    return
  }
  func.func @transform_0(%arg0: i32) -> (i32, i32, i32) {
    %c0_i32 = arith.constant 0 : i32
    %c0_i32_0 = arith.constant 0 : i32
    %c0_i32_1 = arith.constant 0 : i32
    return %arg0, %c0_i32, %c0_i32_0 : i32, i32, i32
  }
  func.func @transform_1(%arg0: i32) -> (i32, i32) {
    %c0_i32 = arith.constant 0 : i32
    %c0_i32_0 = arith.constant 0 : i32
    %c0_i32_1 = arith.constant 0 : i32
    return %c0_i32, %c0_i32_0 : i32, i32
  }
  func.func @transform_2(%arg0: i32) -> (i32, i32) {
    %c0_i32 = arith.constant 0 : i32
    %c0_i32_0 = arith.constant 0 : i32
    %c0_i32_1 = arith.constant 0 : i32
    return %c0_i32, %c0_i32_0 : i32, i32
  }
  func.func @transform_3(%arg0: i32) -> i32 {
    %c0_i32 = arith.constant 0 : i32
    %c0_i32_0 = arith.constant 0 : i32
    return %c0_i32 : i32
  }
  func.func @transform_4(%arg0: i32) -> (i32, i32, i32) {
    %c0_i32 = arith.constant 0 : i32
    %c0_i32_0 = arith.constant 0 : i32
    %c0_i32_1 = arith.constant 0 : i32
    return %arg0, %c0_i32, %c0_i32_0 : i32, i32, i32
  }
}

</mosaic_0001>

<llo_original>
// kernel: tpu_custom_call.1
$region0: #{tpu_custom_call.1}
  #allocation0 [shape = 'u32[]', space=smem, size = 0x4, offset = 0x4, fixed_abs, tag = 'smem constant byte address 0x4 - core index']
  #allocation1 [shape = 'u32[144,128]{1,0:T(1,128)}', space=vmem, size = 0x12000, scoped, tag = 'internal scratch']
  %s0 = inlined_call_operand.hbm [shape: f32[2,8,256], index: 0, kind: input, shape index: {}]
  %s1 = inlined_call_operand.hbm [shape: f32[8,8], index: 1, kind: input, shape index: {}]
  %s2 = inlined_call_operand.hbm [shape: f32[14,256], index: 2, kind: input, shape index: {}]
  %s3 = inlined_call_operand.vmem [shape: f32[98], index: 3, kind: input, shape index: {}]
  %s4 = inlined_call_operand.hbm [shape: f32[2,8,256], index: 4, kind: output, shape index: {}]
  %s5 = sld [smem:[#allocation0]]
  $region65: #{tpu_custom_call.1} parent=0
    _
  %s7 = ssub.s32 1, %s5
  %s8 = scalar_select 0, %s7, %s5
  $region1: #{tpu_custom_call.1} parent=0
    #allocation2 [shape = 'u8[16384]{0}', space=vmem, size = 0x4000, scoped, tag = 'input window, operand 0']
    #allocation3 [shape = 's32[2]{0}', space=sflag, size = 0x8, scoped, tag = 'scoped memory for tpu_custom_call.1']
    #allocation4 [shape = 's32[2]{0}', space=sflag, size = 0x8, scoped, tag = 'scoped memory for tpu_custom_call.1']
    #allocation5 [shape = 's32[2]{0}', space=sflag, size = 0x8, scoped, tag = 'scoped memory for tpu_custom_call.1']
    #allocation6 [shape = 'u8[4096]{0}', space=vmem, size = 0x1000, scoped, tag = 'input window, operand 1, single buffered']
    #allocation7 [shape = 's32[1]{0}', space=sflag, size = 0x4, scoped, tag = 'scoped memory for tpu_custom_call.1']
    #allocation8 [shape = 'u8[16384]{0}', space=vmem, size = 0x4000, scoped, tag = 'input window, operand 2, single buffered']
    #allocation9 [shape = 'u8[512]{0}', space=smem, size = 0x200, scoped, tag = 'input window, operand 3, single buffered']
    #allocation10 [shape = 'u8[16384]{0}', space=vmem, size = 0x4000, scoped, tag = 'output window, operand 0']
    %9 = vsyncpa [#allocation3], 0
    %s10 = scalar_lea.sflag [#allocation3], 1
    %11 = vsyncpa %s10, 0
    %12 = vsyncpa [#allocation7], 0
    %13 = vsyncpa [#allocation5], 0
    %14 = vsyncpa [#allocation4], 0
    %s15 = scalar_lea.sflag [#allocation4], 1
    %16 = vsyncpa %s15, 0
    loop: start=0, step=1, limit=4
    $region2: #{tpu_custom_call.1} parent=1 // loop_pre_header
      _
    $region3: #{tpu_custom_call.1} parent=1 // loop_header
      %s18 = sphi 0, %s22
      %p19 = scmp.ge.s32.totalorder %s18, 4
      %s28 = sphi 0, %s30
      %s31 = sphi 0, %s28
      %s32 = sphi 0, %s31
      %s48 = sphi 0, %s32
      %s52 = sphi 0, %s52
      %s54 = sphi 0, %s52
      %s55 = sphi 0, %s54
      %s69 = sphi 0, %s55
      %s73 = sphi 0, %s73
      %s75 = sphi 0, %s73
      %s76 = sphi 0, %s75
      %s90 = sphi 0, %s76
      %s94 = sphi 0, %s94
      %s96 = sphi 0, %s94
      %s97 = sphi 0, %s96
      %s111 = sphi 0, %s97
      %s117 = sphi 0, %s119
      %s120 = sphi 0, %s117
      %s121 = sphi 0, %s120
      %s137 = sphi 0, %s121
    $region4: #{tpu_custom_call.1} parent=1 // loop_header_branch
      %21 = sbr.rel (%p19) target = $region8
    $region5: #{tpu_custom_call.1} parent=1 // loop_body
      %s23 = ssub.s32 %s18, 1
      %s24 = ssub.s32 %s18, 2
      %s25 = sadd.s32 %s18, 1
      %s26 = ssub.s32 %s18, %s25
      %p27 = scmp.eq.s32.totalorder %s26, 0
      %s29 = sadd.s32 %s28, 1
      %s30 = scalar_select %p27, %s28, %s29
      %p33 = pneg %p27
      %p34 = scmp.eq.s32.totalorder %s18, 1
      %p35 = por %p33, %p34
      %p36 = scmp.ne.s32.totalorder %s28, %s31
      %p37 = scmp.eq.s32.totalorder %s18, 0
      %p38 = por %p36, %p37
      %p39 = scmp.ne.s32.totalorder %s28, %s31
      %p40 = scmp.eq.s32.totalorder %s23, 1
      %p41 = por %p39, %p40
      %p42 = scmp.ne.s32.totalorder %s31, %s32
      %p43 = scmp.eq.s32.totalorder %s23, 0
      %p44 = por %p42, %p43
      %p45 = scmp.ne.s32.totalorder %s31, %s32
      %p46 = scmp.eq.s32.totalorder %s24, 1
      %p47 = por %p45, %p46
      %p49 = scmp.ne.s32.totalorder %s32, %s48
      %p50 = scmp.eq.s32.totalorder %s24, 0
      %p51 = por %p49, %p50
      %s53 = sadd.s32 %s52, 1
      %p56 = scmp.eq.s32.totalorder %s18, 1
      %p57 = scmp.ne.s32.totalorder %s52, %s54
      %p58 = scmp.eq.s32.totalorder %s18, 0
      %p59 = por %p57, %p58
      %p60 = scmp.ne.s32.totalorder %s52, %s54
      %p61 = scmp.eq.s32.totalorder %s23, 1
      %p62 = por %p60, %p61
      %p63 = scmp.ne.s32.totalorder %s54, %s55
      %p64 = scmp.eq.s32.totalorder %s23, 0
      %p65 = por %p63, %p64
      %p66 = scmp.ne.s32.totalorder %s54, %s55
      %p67 = scmp.eq.s32.totalorder %s24, 1
      %p68 = por %p66, %p67
      %p70 = scmp.ne.s32.totalorder %s55, %s69
      %p71 = scmp.eq.s32.totalorder %s24, 0
      %p72 = por %p70, %p71
      %s74 = sadd.s32 %s73, 1
      %p77 = scmp.eq.s32.totalorder %s18, 1
      %p78 = scmp.ne.s32.totalorder %s73, %s75
      %p79 = scmp.eq.s32.totalorder %s18, 0
      %p80 = por %p78, %p79
      %p81 = scmp.ne.s32.totalorder %s73, %s75
      %p82 = scmp.eq.s32.totalorder %s23, 1
      %p83 = por %p81, %p82
      %p84 = scmp.ne.s32.totalorder %s75, %s76
      %p85 = scmp.eq.s32.totalorder %s23, 0
      %p86 = por %p84, %p85
      %p87 = scmp.ne.s32.totalorder %s75, %s76
      %p88 = scmp.eq.s32.totalorder %s24, 1
      %p89 = por %p87, %p88
      %p91 = scmp.ne.s32.totalorder %s76, %s90
      %p92 = scmp.eq.s32.totalorder %s24, 0
      %p93 = por %p91, %p92
      %s95 = sadd.s32 %s94, 1
      %p98 = scmp.eq.s32.totalorder %s18, 1
      %p99 = scmp.ne.s32.totalorder %s94, %s96
      %p100 = scmp.eq.s32.totalorder %s18, 0
      %p101 = por %p99, %p100
      %p102 = scmp.ne.s32.totalorder %s94, %s96
      %p103 = scmp.eq.s32.totalorder %s23, 1
      %p104 = por %p102, %p103
      %p105 = scmp.ne.s32.totalorder %s96, %s97
      %p106 = scmp.eq.s32.totalorder %s23, 0
      %p107 = por %p105, %p106
      %p108 = scmp.ne.s32.totalorder %s96, %s97
      %p109 = scmp.eq.s32.totalorder %s24, 1
      %p110 = por %p108, %p109
      %p112 = scmp.ne.s32.totalorder %s97, %s111
      %p113 = scmp.eq.s32.totalorder %s24, 0
      %p114 = por %p112, %p113
      %s115 = ssub.s32 %s18, %s25
      %p116 = scmp.eq.s32.totalorder %s115, 0
      %s118 = sadd.s32 %s117, 1
      %s119 = scalar_select %p116, %s117, %s118
      %p122 = pneg %p116
      %p123 = scmp.eq.s32.totalorder %s18, 1
      %p124 = por %p122, %p123
      %p125 = scmp.ne.s32.totalorder %s117, %s120
      %p126 = scmp.eq.s32.totalorder %s18, 0
      %p127 = por %p125, %p126
      %p128 = scmp.ne.s32.totalorder %s117, %s120
      %p129 = scmp.eq.s32.totalorder %s23, 1
      %p130 = por %p128, %p129
      %p131 = scmp.ne.s32.totalorder %s120, %s121
      %p132 = scmp.eq.s32.totalorder %s23, 0
      %p133 = por %p131, %p132
      %p134 = scmp.ne.s32.totalorder %s120, %s121
      %p135 = scmp.eq.s32.totalorder %s24, 1
      %p136 = por %p134, %p135
      %p138 = scmp.ne.s32.totalorder %s121, %s137
      %p139 = scmp.eq.s32.totalorder %s24, 0
      %p140 = por %p138, %p139
      %p141 = scmp.le.s32.totalorder 1, %s18
      %p142 = scmp.lt.s32.totalorder %s18, 3
      %p143 = pnand %p141, %p142
      %p144 = pneg %p143
      // Predicated region
      $region9: #{tpu_custom_call.1} parent=5 // pred_check
        _
      $region10: #{tpu_custom_call.1} parent=5 // pred_check_branch
        %146 = sbr.rel (%p143) target = $region12
      $region11: #{tpu_custom_call.1} parent=5 // pred_region
        %s147 = ssub.s32 %s18, 1
        // Predicated region
        $region13: #{tpu_custom_call.1} parent=11 // pred_check
          %p148 = pneg %p65
        $region14: #{tpu_custom_call.1} parent=11 // pred_check_branch
          %150 = sbr.rel (%p148) target = $region16
        $region15: #{tpu_custom_call.1} parent=11 // pred_region
          %s152 = ssub.s32 128, 128
          %153 = vsyncadd [#allocation7], %s152
          %s155 = sshll.u32 [#allocation6], 4
          %s156 = int_to_ptr.vmem [resolvable:$true] %s155
          %158 = dma.hbm_to_vmem [thread:$0]  %s1, 128, %s156, [#allocation7]
        $region16: #{tpu_custom_call.1} parent=11 // pred_fallthru
          _
        // Predicated region
        $region17: #{tpu_custom_call.1} parent=11 // pred_check
          %p159 = pneg %p86
        $region18: #{tpu_custom_call.1} parent=11 // pred_check_branch
          %161 = sbr.rel (%p159) target = $region20
        $region19: #{tpu_custom_call.1} parent=11 // pred_region
          %s163 = ssub.s32 512, 512
          %164 = vsyncadd [#allocation7], %s163
          %s165 = sshll.u32 [#allocation8], 4
          %s166 = int_to_ptr.vmem [resolvable:$true] %s165
          %171 = dma.hbm_to_vmem [thread:$0]  %s2, 512, %s166, [#allocation7], 256, 256, 16
        $region20: #{tpu_custom_call.1} parent=11 // pred_fallthru
          _
        // Predicated region
        $region21: #{tpu_custom_call.1} parent=11 // pred_check
          %p172 = pneg %p107
        $region22: #{tpu_custom_call.1} parent=11 // pred_check_branch
          %174 = sbr.rel (%p172) target = $region24
        $region23: #{tpu_custom_call.1} parent=11 // pred_region
          %s176 = ssub.s32 16, 16
          %177 = vsyncadd [#allocation5], %s176
          %s179 = sshll.u32 %s3, 4
          %s180 = int_to_ptr.vmem [resolvable:$true] %s179
          %182 = dma.vmem_to_smem %s180, 16, [#allocation9], [#allocation5]
        $region24: #{tpu_custom_call.1} parent=11 // pred_fallthru
          _
      $region12: #{tpu_custom_call.1} parent=5 // pred_fallthru
        _
      %p183 = scmp.lt.s32.totalorder %s18, 2
      // Predicated region
      $region25: #{tpu_custom_call.1} parent=5 // pred_check
        %p184 = pneg %p183
      $region26: #{tpu_custom_call.1} parent=5 // pred_check_branch
        %186 = sbr.rel (%p184) target = $region28
      $region27: #{tpu_custom_call.1} parent=5 // pred_region
        // Predicated region
        $region29: #{tpu_custom_call.1} parent=27 // pred_check
          %p187 = pneg %p38
        $region30: #{tpu_custom_call.1} parent=27 // pred_check_branch
          %189 = sbr.rel (%p187) target = $region32
        $region31: #{tpu_custom_call.1} parent=27 // pred_region
          %s190 = sand.u32 %s28, 1
          %s191 = scalar_lea.sflag [#allocation3], %s190
          %s192 = sand.u32 %s28, 1
          %s193 = smul.addr %s192, 16
          %s194 = scalar_lea.vmem [#allocation2], %s193
          %s196 = ssub.s32 256, 256
          %197 = vsyncadd %s191, %s196
          %s198 = smul.addr %s18, 2
          %s199 = smul.addr %s198, 128
          %s200 = scalar_lea.hbm %s0, %s199
          %s202 = sshll.u32 %s194, 4
          %s203 = int_to_ptr.vmem [resolvable:$true] %s202
          %205 = dma.hbm_to_vmem [thread:$0]  %s200, 256, %s203, %s191
        $region32: #{tpu_custom_call.1} parent=27 // pred_fallthru
          _
      $region28: #{tpu_custom_call.1} parent=5 // pred_fallthru
        _
      %p206 = scmp.le.s32.totalorder 1, %s18
      %p207 = scmp.lt.s32.totalorder %s18, 3
      %p208 = pnand %p206, %p207
      %p209 = pneg %p208
      // Predicated region
      $region33: #{tpu_custom_call.1} parent=5 // pred_check
        _
      $region34: #{tpu_custom_call.1} parent=5 // pred_check_branch
        %211 = sbr.rel (%p208) target = $region36
      $region35: #{tpu_custom_call.1} parent=5 // pred_region
        %s212 = ssub.s32 %s18, 1
        %s213 = sand.u32 %s31, 1
        %s214 = scalar_lea.sflag [#allocation3], %s213
        %s215 = sand.u32 %s31, 1
        %s216 = smul.addr %s215, 16
        %s217 = scalar_lea.vmem [#allocation2], %s216
        // Predicated region
        $region37: #{tpu_custom_call.1} parent=35 // pred_check
          %p218 = pneg %p44
        $region38: #{tpu_custom_call.1} parent=35 // pred_check_branch
          %220 = sbr.rel (%p218) target = $region40
        $region39: #{tpu_custom_call.1} parent=35 // pred_region
          %221 = dma.done %s214, 256
        $region40: #{tpu_custom_call.1} parent=35 // pred_fallthru
          _
        // Predicated region
        $region41: #{tpu_custom_call.1} parent=35 // pred_check
          %p222 = pneg %p65
        $region42: #{tpu_custom_call.1} parent=35 // pred_check_branch
          %224 = sbr.rel (%p222) target = $region44
        $region43: #{tpu_custom_call.1} parent=35 // pred_region
          %225 = dma.done [#allocation7], 128
        $region44: #{tpu_custom_call.1} parent=35 // pred_fallthru
          _
        // Predicated region
        $region45: #{tpu_custom_call.1} parent=35 // pred_check
          %p226 = pneg %p86
        $region46: #{tpu_custom_call.1} parent=35 // pred_check_branch
          %228 = sbr.rel (%p226) target = $region48
        $region47: #{tpu_custom_call.1} parent=35 // pred_region
          %229 = dma.done [#allocation7], 512
        $region48: #{tpu_custom_call.1} parent=35 // pred_fallthru
          _
        // Predicated region
        $region49: #{tpu_custom_call.1} parent=35 // pred_check
          %p230 = pneg %p107
        $region50: #{tpu_custom_call.1} parent=35 // pred_check_branch
          %232 = sbr.rel (%p230) target = $region52
        $region51: #{tpu_custom_call.1} parent=35 // pred_region
          %233 = dma.done [#allocation5], 16
        $region52: #{tpu_custom_call.1} parent=35 // pred_fallthru
          _
        %234 = sfence
        %s235 = sand.u32 %s31, 1
        %s236 = scalar_lea.sflag [#allocation3], %s235
        %s237 = sand.u32 %s31, 1
        %s238 = smul.addr %s237, 16
        %s239 = scalar_lea.vmem [#allocation2], %s238
        %p240 = pneg %p44
        %p241 = pneg %p41
        %p242 = pneg %p65
        %p243 = pneg %p62
        %p244 = pneg %p86
        %p245 = pneg %p83
        %p246 = pneg %p107
        %p247 = pneg %p104
        %p248 = pneg %p133
        %p249 = pneg %p130
        %s250 = sand.u32 %s120, 1
        %s251 = scalar_lea.sflag [#allocation4], %s250
        %s252 = sand.u32 %s120, 1
        %s253 = smul.addr %s252, 16
        %s254 = scalar_lea.vmem [#allocation10], %s253
        %v255 = vld [vmem:[%s217] sm:$0xff]
        %v256 = vld [vmem:[%s217 + $0x8] sm:$0xff]
        %v257 = vadd.f32 %v255, %v256
        %258 = vadd.xlane.f32.xlu0 %v257
        %v259 = vpop.xlane.xlu0 %258
        %v260 = vrcp.pop 256.0
        %v261 = vmul.f32 %v259, %v260
        %v262 = vld [vmem:[#allocation6] sm:$0xff]
        %v264 = vlaneseq
        %v265 = vand.u32 %v264, 127
        %v266 = vlaneseq
        %v267 = vshrl.u32 %v266, 7
        %v268 = vsub.s32 %v265, %v267
        %v269 = vrot.slane %v261, %v268
        %vm270 = vcmask 64512
        %v271 = vsel %vm270, %v269, 0
        %273 = vmatprep.subr.mxu0 0.0
        %274 = vmatpush1.msra.mxu0 %v262
        %275 = vmatprep.subr.mxu0 0.0
        %276 = vmatpush1.msra.mxu0 0.0
        %277 = vmatprep.subr.mxu0 0.0
        %278 = vmatpush1.msra.mxu0 0.0
        %279 = vmatprep.subr.mxu0 0.0
        %280 = vmatpush1.msra.mxu0 0.0
        %281 = vmatprep.subr.mxu0 0.0
        %282 = vmatpush1.msra.mxu0 0.0
        %283 = vmatprep.subr.mxu0 0.0
        %284 = vmatpush1.msra.mxu0 0.0
        %285 = vmatprep.subr.mxu0 0.0
        %286 = vmatpush1.msra.mxu0 0.0
        %287 = vmatprep.subr.mxu0 0.0
        %288 = vmatpush1.msra.mxu0 0.0
        %289 = vmatprep.subr.mxu0 0.0
        %290 = vmatpush1.msra.mxu0 0.0
        %291 = vmatprep.subr.mxu0 0.0
        %292 = vmatpush1.msra.mxu0 0.0
        %293 = vmatprep.subr.mxu0 0.0
        %294 = vmatpush1.msra.mxu0 0.0
        %295 = vmatprep.subr.mxu0 0.0
        %296 = vmatpush1.msra.mxu0 0.0
        %297 = vmatprep.subr.mxu0 0.0
        %298 = vmatpush1.msra.mxu0 0.0
        %299 = vmatprep.subr.mxu0 0.0
        %300 = vmatpush1.msra.mxu0 0.0
        %301 = vmatprep.subr.mxu0 0.0
        %302 = vmatpush1.msra.mxu0 0.0
        %303 = vmatprep.subr.mxu0 0.0
        %304 = vmatpush1.msra.mxu0 0.0
        %305 = vmatprep.subr.mxu0 0.0
        %306 = vmatpush1.msra.mxu0 0.0
        %307 = vmatprep.subr.mxu0 0.0
        %308 = vmatpush1.msra.mxu0 0.0
        %309 = vmatprep.subr.mxu0 0.0
        %310 = vmatpush1.msra.mxu0 0.0
        %311 = vmatprep.subr.mxu0 0.0
        %312 = vmatpush1.msra.mxu0 0.0
        %313 = vmatprep.subr.mxu0 0.0
        %314 = vmatpush1.msra.mxu0 0.0
        %315 = vmatprep.subr.mxu0 0.0
        %316 = vmatpush1.msra.mxu0 0.0
        %317 = vmatprep.subr.mxu0 0.0
        %318 = vmatpush1.msra.mxu0 0.0
        %319 = vmatprep.subr.mxu0 0.0
        %320 = vmatpush1.msra.mxu0 0.0
        %321 = vmatprep.subr.mxu0 0.0
        %322 = vmatpush1.msra.mxu0 0.0
        %323 = vmatprep.subr.mxu0 0.0
        %324 = vmatpush1.msra.mxu0 0.0
        %325 = vmatprep.subr.mxu0 0.0
        %326 = vmatpush1.msra.mxu0 0.0
        %327 = vmatprep.subr.mxu0 0.0
        %328 = vmatpush1.msra.mxu0 0.0
        %329 = vmatprep.subr.mxu0 0.0
        %330 = vmatpush1.msra.mxu0 0.0
        %331 = vmatprep.subr.mxu0 0.0
        %332 = vmatpush1.msra.mxu0 0.0
        %333 = vmatprep.subr.mxu0 0.0
        %334 = vmatpush1.msra.mxu0 0.0
        %335 = vmatprep.subr.mxu0 0.0
        %336 = vmatpush1.msra.mxu0 0.0
        %337 = vmatprep.mubr.f32.mxu0 0.0
        %338 = vmatmul.mubr.f32.gmra.mrb[0].mxu0 %v271
        %v339 = vpop.f32.mrb[0].mxu0
        %v340 = vadd.f32 0.0, %v339
        %v341 = vpop.f32.mrb[0].mxu0
        %342 = vdwg.mxu0
        %v343 = vxor.u32 %v340, 2147483648
        %v344 = vmul.f32 %v343, 1.442695
        %v345 = vpow.pop %v344
        %v346 = vadd.f32 %v345, 1.0
        %v347 = vrcp.pop %v346
        %v348 = vmul.f32 1.0, %v347
        %v349 = vlaneseq
        %v350 = vshrl.u32 %v349, 7
        %v351 = vsub.s32 0, %v350
        %v352 = vrot.slane %v348, %v351
        %354 = vbcast.lane.b32.xlu0 %v352, 256
        %v355 = vpop.permute.xlu0 %354
        %v356 = vmul.f32 %v255, %v355
        %v357 = vmul.f32 %v256, %v355
        %v358 = vrot.slane %v356, 4
        %v359 = vadd.f32 %v356, %v358
        %v360 = vrot.slane %v359, 2
        %v361 = vadd.f32 %v359, %v360
        %v362 = vrot.slane %v361, 1
        %v363 = vadd.f32 %v361, %v362
        %v364 = vrot.slane %v357, 4
        %v365 = vadd.f32 %v357, %v364
        %v366 = vrot.slane %v365, 2
        %v367 = vadd.f32 %v365, %v366
        %v368 = vrot.slane %v367, 1
        %v369 = vadd.f32 %v367, %v368
        %v370 = vrcp.pop 8.0
        %v371 = vmul.f32 %v363, %v370
        %v372 = vmul.f32 %v369, %v370
        %v373 = vrot.slane %v356, 4
        %v374 = vmax.f32 %v356, %v373
        %v375 = vrot.slane %v374, 2
        %v376 = vmax.f32 %v374, %v375
        %v377 = vrot.slane %v376, 1
        %v378 = vmax.f32 %v376, %v377
        %v379 = vrot.slane %v357, 4
        %v380 = vmax.f32 %v357, %v379
        %v381 = vrot.slane %v380, 2
        %v382 = vmax.f32 %v380, %v381
        %v383 = vrot.slane %v382, 1
        %v384 = vmax.f32 %v382, %v383
        %v385 = vld [vmem:[#allocation8] sm:$0xff]
        %v386 = vld [vmem:[#allocation8 + $0x8] sm:$0xff]
        %v387 = vld [vmem:[#allocation8 + $0x10] sm:$0x3f]
        %v388 = vld [vmem:[#allocation8 + $0x18] sm:$0x3f]
        %389 = vrot.lane.b32.xlu0 %v371, 3
        %v390 = vpop.permute.xlu0 %389
        %391 = vrot.lane.b32.xlu0 %v372, 3
        %v392 = vpop.permute.xlu0 %391
        %vm393 = vcmp.lt.s32.totalorder %v265, 3
        %v394 = vsel %vm393, %v390, %v392
        %v395 = vsel %vm393, %v392, %v390
        %v396 = vmul.f32 %v395, %v385
        %v397 = vmul.f32 %v394, %v386
        %398 = vrot.lane.b32.xlu0 %v378, 3
        %v399 = vpop.permute.xlu0 %398
        %400 = vrot.lane.b32.xlu0 %v384, 3
        %v401 = vpop.permute.xlu0 %400
        %v402 = vsel %vm393, %v399, %v401
        %v403 = vsel %vm393, %v401, %v399
        %v404 = vmul.f32 %v403, %v385
        %v405 = vmul.f32 %v402, %v386
        %406 = vrot.lane.b32.xlu0 %v371, 2
        %v407 = vpop.permute.xlu0 %406
        %408 = vrot.lane.b32.xlu0 %v372, 2
        %v409 = vpop.permute.xlu0 %408
        %vm410 = vcmp.lt.s32.totalorder %v265, 2
        %v411 = vsel %vm410, %v407, %v409
        %v412 = vsel %vm410, %v409, %v407
        %v415 = vrot.slane %v385, 1
        %v416 = vrot.slane %v386, 1
        %v419 = vmul.f32 %v412, %v415
        %v420 = vmul.f32 %v411, %v416
        %421 = vrot.lane.b32.xlu0 %v378, 2
        %v422 = vpop.permute.xlu0 %421
        %423 = vrot.lane.b32.xlu0 %v384, 2
        %v424 = vpop.permute.xlu0 %423
        %v425 = vsel %vm410, %v422, %v424
        %v426 = vsel %vm410, %v424, %v422
        %v427 = vmul.f32 %v426, %v415
        %v428 = vmul.f32 %v425, %v416
        %429 = vrot.lane.b32.xlu0 %v371, 1
        %v430 = vpop.permute.xlu0 %429
        %431 = vrot.lane.b32.xlu0 %v372, 1
        %v432 = vpop.permute.xlu0 %431
        %vm433 = vcmp.lt.s32.totalorder %v265, 1
        %v434 = vsel %vm433, %v430, %v432
        %v435 = vsel %vm433, %v432, %v430
        %v436 = vrot.slane %v385, 2
        %v437 = vrot.slane %v386, 2
        %v440 = vmul.f32 %v435, %v436
        %v441 = vmul.f32 %v434, %v437
        %442 = vrot.lane.b32.xlu0 %v378, 1
        %v443 = vpop.permute.xlu0 %442
        %444 = vrot.lane.b32.xlu0 %v384, 1
        %v445 = vpop.permute.xlu0 %444
        %v446 = vsel %vm433, %v443, %v445
        %v447 = vsel %vm433, %v445, %v443
        %v448 = vmul.f32 %v447, %v436
        %v449 = vmul.f32 %v446, %v437
        %450 = vrot.lane.b32.xlu0 %v371, 127
        %v451 = vpop.permute.xlu0 %450
        %452 = vrot.lane.b32.xlu0 %v372, 127
        %v453 = vpop.permute.xlu0 %452
        %vm454 = vcmp.lt.s32.totalorder %v265, 127
        %v455 = vsel %vm454, %v451, %v453
        %v456 = vsel %vm454, %v453, %v451
        %v457 = vrot.slane %v385, 4
        %v458 = vrot.slane %v386, 4
        %v461 = vmul.f32 %v455, %v457
        %v462 = vmul.f32 %v456, %v458
        %463 = vrot.lane.b32.xlu0 %v378, 127
        %v464 = vpop.permute.xlu0 %463
        %465 = vrot.lane.b32.xlu0 %v384, 127
        %v466 = vpop.permute.xlu0 %465
        %v467 = vsel %vm454, %v464, %v466
        %v468 = vsel %vm454, %v466, %v464
        %v469 = vmul.f32 %v467, %v457
        %v470 = vmul.f32 %v468, %v458
        %471 = vrot.lane.b32.xlu0 %v371, 126
        %v472 = vpop.permute.xlu0 %471
        %473 = vrot.lane.b32.xlu0 %v372, 126
        %v474 = vpop.permute.xlu0 %473
        %vm475 = vcmp.lt.s32.totalorder %v265, 126
        %v476 = vsel %vm475, %v472, %v474
        %v477 = vsel %vm475, %v474, %v472
        %v478 = vrot.slane %v385, 5
        %v479 = vrot.slane %v386, 5
        %v482 = vmul.f32 %v476, %v478
        %v483 = vmul.f32 %v477, %v479
        %484 = vrot.lane.b32.xlu0 %v378, 126
        %v485 = vpop.permute.xlu0 %484
        %486 = vrot.lane.b32.xlu0 %v384, 126
        %v487 = vpop.permute.xlu0 %486
        %v488 = vsel %vm475, %v485, %v487
        %v489 = vsel %vm475, %v487, %v485
        %v490 = vmul.f32 %v488, %v478
        %v491 = vmul.f32 %v489, %v479
        %492 = vrot.lane.b32.xlu0 %v371, 125
        %v493 = vpop.permute.xlu0 %492
        %494 = vrot.lane.b32.xlu0 %v372, 125
        %v495 = vpop.permute.xlu0 %494
        %vm496 = vcmp.lt.s32.totalorder %v265, 125
        %v497 = vsel %vm496, %v493, %v495
        %v498 = vsel %vm496, %v495, %v493
        %v499 = vrot.slane %v385, 6
        %v500 = vrot.slane %v386, 6
        %v503 = vmul.f32 %v497, %v499
        %v504 = vmul.f32 %v498, %v500
        %505 = vrot.lane.b32.xlu0 %v378, 125
        %v506 = vpop.permute.xlu0 %505
        %507 = vrot.lane.b32.xlu0 %v384, 125
        %v508 = vpop.permute.xlu0 %507
        %v509 = vsel %vm496, %v506, %v508
        %v510 = vsel %vm496, %v508, %v506
        %v511 = vmul.f32 %v509, %v499
        %v512 = vmul.f32 %v510, %v500
        %s513 = sld [smem:[#allocation9]]
        %v514 = vstv %s513
        %v515 = vmul.f32 %v514, %v396
        %v516 = vmul.f32 %v514, %v397
        %v517 = vadd.f32 %v515, 0.0
        %v518 = vadd.f32 %v516, 0.0
        %s519 = sld [smem:[#allocation9 + $0x31]]
        %v520 = vstv %s519
        %v521 = vmul.f32 %v520, %v404
        %v522 = vmul.f32 %v520, %v405
        %v523 = vadd.f32 %v517, %v521
        %v524 = vadd.f32 %v518, %v522
        %s525 = sld [smem:[#allocation9 + $0x1]]
        %v526 = vstv %s525
        %v527 = vmul.f32 %v526, %v419
        %v528 = vmul.f32 %v526, %v420
        %v529 = vadd.f32 %v523, %v527
        %v530 = vadd.f32 %v524, %v528
        %s531 = sld [smem:[#allocation9 + $0x32]]
        %v532 = vstv %s531
        %v533 = vmul.f32 %v532, %v427
        %v534 = vmul.f32 %v532, %v428
        %v535 = vadd.f32 %v529, %v533
        %v536 = vadd.f32 %v530, %v534
        %s537 = sld [smem:[#allocation9 + $0x2]]
        %v538 = vstv %s537
        %v539 = vmul.f32 %v538, %v440
        %v540 = vmul.f32 %v538, %v441
        %v541 = vadd.f32 %v535, %v539
        %v542 = vadd.f32 %v536, %v540
        %s543 = sld [smem:[#allocation9 + $0x33]]
        %v544 = vstv %s543
        %v545 = vmul.f32 %v544, %v448
        %v546 = vmul.f32 %v544, %v449
        %v547 = vadd.f32 %v541, %v545
        %v548 = vadd.f32 %v542, %v546
        %s549 = sld [smem:[#allocation9 + $0x3]]
        %v550 = vstv %s549
        %v551 = vmul.f32 %v550, %v371
        %v552 = vmul.f32 %v550, %v372
        %v553 = vadd.f32 %v547, %v551
        %v554 = vadd.f32 %v548, %v552
        %s555 = sld [smem:[#allocation9 + $0x34]]
        %v556 = vstv %s555
        %v557 = vmul.f32 %v556, %v378
        %v558 = vmul.f32 %v556, %v384
        %v559 = vadd.f32 %v553, %v557
        %v560 = vadd.f32 %v554, %v558
        %s561 = sld [smem:[#allocation9 + $0x4]]
        %v562 = vstv %s561
        %v563 = vmul.f32 %v562, %v461
        %v564 = vmul.f32 %v562, %v462
        %v565 = vadd.f32 %v559, %v563
        %v566 = vadd.f32 %v560, %v564
        %s567 = sld [smem:[#allocation9 + $0x35]]
        %v568 = vstv %s567
        %v569 = vmul.f32 %v568, %v469
        %v570 = vmul.f32 %v568, %v470
        %v571 = vadd.f32 %v565, %v569
        %v572 = vadd.f32 %v566, %v570
        %s573 = sld [smem:[#allocation9 + $0x5]]
        %v574 = vstv %s573
        %v575 = vmul.f32 %v574, %v482
        %v576 = vmul.f32 %v574, %v483
        %v577 = vadd.f32 %v571, %v575
        %v578 = vadd.f32 %v572, %v576
        %s579 = sld [smem:[#allocation9 + $0x36]]
        %v580 = vstv %s579
        %v581 = vmul.f32 %v580, %v490
        %v582 = vmul.f32 %v580, %v491
        %v583 = vadd.f32 %v577, %v581
        %v584 = vadd.f32 %v578, %v582
        %s585 = sld [smem:[#allocation9 + $0x6]]
        %v586 = vstv %s585
        %v587 = vmul.f32 %v586, %v503
        %v588 = vmul.f32 %v586, %v504
        %v589 = vadd.f32 %v583, %v587
        %v590 = vadd.f32 %v584, %v588
        %s591 = sld [smem:[#allocation9 + $0x37]]
        %v592 = vstv %s591
        %v593 = vmul.f32 %v592, %v511
        %v594 = vmul.f32 %v592, %v512
        %v595 = vadd.f32 %v589, %v593
        %v596 = vadd.f32 %v590, %v594
        %597 = vrot.lane.b32.xlu0 %v595, 48
        %v598 = vpop.permute.xlu0 %597
        %599 = vrot.lane.b32.xlu0 %v596, 48
        %v600 = vpop.permute.xlu0 %599
        %vm601 = vcmp.lt.s32.totalorder %v265, 48
        %v602 = vsel %vm601, %v598, %v600
        %v603 = vsel %vm601, %v600, %v598
        %v604 = vrot.slane %v385, 7
        %v605 = vrot.slane %v386, 7
        %v608 = vmul.f32 %v603, %v604
        %v609 = vmul.f32 %v602, %v605
        %v610 = vadd.f32 %v608, 0.0
        %v611 = vadd.f32 %v609, 0.0
        %s612 = sld [smem:[#allocation9 + $0x7]]
        %v613 = vstv %s612
        %v614 = vmul.f32 %v613, %v396
        %v615 = vmul.f32 %v613, %v397
        %v616 = vadd.f32 %v614, 0.0
        %v617 = vadd.f32 %v615, 0.0
        %s618 = sld [smem:[#allocation9 + $0x38]]
        %v619 = vstv %s618
        %v620 = vmul.f32 %v619, %v404
        %v621 = vmul.f32 %v619, %v405
        %v622 = vadd.f32 %v616, %v620
        %v623 = vadd.f32 %v617, %v621
        %s624 = sld [smem:[#allocation9 + $0x8]]
        %v625 = vstv %s624
        %v626 = vmul.f32 %v625, %v419
        %v627 = vmul.f32 %v625, %v420
        %v628 = vadd.f32 %v622, %v626
        %v629 = vadd.f32 %v623, %v627
        %s630 = sld [smem:[#allocation9 + $0x39]]
        %v631 = vstv %s630
        %v632 = vmul.f32 %v631, %v427
        %v633 = vmul.f32 %v631, %v428
        %v634 = vadd.f32 %v628, %v632
        %v635 = vadd.f32 %v629, %v633
        %s636 = sld [smem:[#allocation9 + $0x9]]
        %v637 = vstv %s636
        %v638 = vmul.f32 %v637, %v440
        %v639 = vmul.f32 %v637, %v441
        %v640 = vadd.f32 %v634, %v638
        %v641 = vadd.f32 %v635, %v639
        %s642 = sld [smem:[#allocation9 + $0x3a]]
        %v643 = vstv %s642
        %v644 = vmul.f32 %v643, %v448
        %v645 = vmul.f32 %v643, %v449
        %v646 = vadd.f32 %v640, %v644
        %v647 = vadd.f32 %v641, %v645
        %s648 = sld [smem:[#allocation9 + $0xa]]
        %v649 = vstv %s648
        %v650 = vmul.f32 %v649, %v371
        %v651 = vmul.f32 %v649, %v372
        %v652 = vadd.f32 %v646, %v650
        %v653 = vadd.f32 %v647, %v651
        %s654 = sld [smem:[#allocation9 + $0x3b]]
        %v655 = vstv %s654
        %v656 = vmul.f32 %v655, %v378
        %v657 = vmul.f32 %v655, %v384
        %v658 = vadd.f32 %v652, %v656
        %v659 = vadd.f32 %v653, %v657
        %s660 = sld [smem:[#allocation9 + $0xb]]
        %v661 = vstv %s660
        %v662 = vmul.f32 %v661, %v461
        %v663 = vmul.f32 %v661, %v462
        %v664 = vadd.f32 %v658, %v662
        %v665 = vadd.f32 %v659, %v663
        %s666 = sld [smem:[#allocation9 + $0x3c]]
        %v667 = vstv %s666
        %v668 = vmul.f32 %v667, %v469
        %v669 = vmul.f32 %v667, %v470
        %v670 = vadd.f32 %v664, %v668
        %v671 = vadd.f32 %v665, %v669
        %s672 = sld [smem:[#allocation9 + $0xc]]
        %v673 = vstv %s672
        %v674 = vmul.f32 %v673, %v482
        %v675 = vmul.f32 %v673, %v483
        %v676 = vadd.f32 %v670, %v674
        %v677 = vadd.f32 %v671, %v675
        %s678 = sld [smem:[#allocation9 + $0x3d]]
        %v679 = vstv %s678
        %v680 = vmul.f32 %v679, %v490
        %v681 = vmul.f32 %v679, %v491
        %v682 = vadd.f32 %v676, %v680
        %v683 = vadd.f32 %v677, %v681
        %s684 = sld [smem:[#allocation9 + $0xd]]
        %v685 = vstv %s684
        %v686 = vmul.f32 %v685, %v503
        %v687 = vmul.f32 %v685, %v504
        %v688 = vadd.f32 %v682, %v686
        %v689 = vadd.f32 %v683, %v687
        %s690 = sld [smem:[#allocation9 + $0x3e]]
        %v691 = vstv %s690
        %v692 = vmul.f32 %v691, %v511
        %v693 = vmul.f32 %v691, %v512
        %v694 = vadd.f32 %v688, %v692
        %v695 = vadd.f32 %v689, %v693
        %696 = vrot.lane.b32.xlu0 %v694, 32
        %v697 = vpop.permute.xlu0 %696
        %698 = vrot.lane.b32.xlu0 %v695, 32
        %v699 = vpop.permute.xlu0 %698
        %vm700 = vcmp.lt.s32.totalorder %v265, 32
        %v701 = vsel %vm700, %v697, %v699
        %v702 = vsel %vm700, %v699, %v697
        %v703 = vmul.f32 %v702, %v387
        %v704 = vmul.f32 %v701, %v388
        %v705 = vadd.f32 %v610, %v703
        %v706 = vadd.f32 %v611, %v704
        %s707 = sld [smem:[#allocation9 + $0xe]]
        %v708 = vstv %s707
        %v709 = vmul.f32 %v708, %v396
        %v710 = vmul.f32 %v708, %v397
        %v711 = vadd.f32 %v709, 0.0
        %v712 = vadd.f32 %v710, 0.0
        %s713 = sld [smem:[#allocation9 + $0x3f]]
        %v714 = vstv %s713
        %v715 = vmul.f32 %v714, %v404
        %v716 = vmul.f32 %v714, %v405
        %v717 = vadd.f32 %v711, %v715
        %v718 = vadd.f32 %v712, %v716
        %s719 = sld [smem:[#allocation9 + $0xf]]
        %v720 = vstv %s719
        %v721 = vmul.f32 %v720, %v419
        %v722 = vmul.f32 %v720, %v420
        %v723 = vadd.f32 %v717, %v721
        %v724 = vadd.f32 %v718, %v722
        %s725 = sld [smem:[#allocation9 + $0x40]]
        %v726 = vstv %s725
        %v727 = vmul.f32 %v726, %v427
        %v728 = vmul.f32 %v726, %v428
        %v729 = vadd.f32 %v723, %v727
        %v730 = vadd.f32 %v724, %v728
        %s731 = sld [smem:[#allocation9 + $0x10]]
        %v732 = vstv %s731
        %v733 = vmul.f32 %v732, %v440
        %v734 = vmul.f32 %v732, %v441
        %v735 = vadd.f32 %v729, %v733
        %v736 = vadd.f32 %v730, %v734
        %s737 = sld [smem:[#allocation9 + $0x41]]
        %v738 = vstv %s737
        %v739 = vmul.f32 %v738, %v448
        %v740 = vmul.f32 %v738, %v449
        %v741 = vadd.f32 %v735, %v739
        %v742 = vadd.f32 %v736, %v740
        %s743 = sld [smem:[#allocation9 + $0x11]]
        %v744 = vstv %s743
        %v745 = vmul.f32 %v744, %v371
        %v746 = vmul.f32 %v744, %v372
        %v747 = vadd.f32 %v741, %v745
        %v748 = vadd.f32 %v742, %v746
        %s749 = sld [smem:[#allocation9 + $0x42]]
        %v750 = vstv %s749
        %v751 = vmul.f32 %v750, %v378
        %v752 = vmul.f32 %v750, %v384
        %v753 = vadd.f32 %v747, %v751
        %v754 = vadd.f32 %v748, %v752
        %s755 = sld [smem:[#allocation9 + $0x12]]
        %v756 = vstv %s755
        %v757 = vmul.f32 %v756, %v461
        %v758 = vmul.f32 %v756, %v462
        %v759 = vadd.f32 %v753, %v757
        %v760 = vadd.f32 %v754, %v758
        %s761 = sld [smem:[#allocation9 + $0x43]]
        %v762 = vstv %s761
        %v763 = vmul.f32 %v762, %v469
        %v764 = vmul.f32 %v762, %v470
        %v765 = vadd.f32 %v759, %v763
        %v766 = vadd.f32 %v760, %v764
        %s767 = sld [smem:[#allocation9 + $0x13]]
        %v768 = vstv %s767
        %v769 = vmul.f32 %v768, %v482
        %v770 = vmul.f32 %v768, %v483
        %v771 = vadd.f32 %v765, %v769
        %v772 = vadd.f32 %v766, %v770
        %s773 = sld [smem:[#allocation9 + $0x44]]
        %v774 = vstv %s773
        %v775 = vmul.f32 %v774, %v490
        %v776 = vmul.f32 %v774, %v491
        %v777 = vadd.f32 %v771, %v775
        %v778 = vadd.f32 %v772, %v776
        %s779 = sld [smem:[#allocation9 + $0x14]]
        %v780 = vstv %s779
        %v781 = vmul.f32 %v780, %v503
        %v782 = vmul.f32 %v780, %v504
        %v783 = vadd.f32 %v777, %v781
        %v784 = vadd.f32 %v778, %v782
        %s785 = sld [smem:[#allocation9 + $0x45]]
        %v786 = vstv %s785
        %v787 = vmul.f32 %v786, %v511
        %v788 = vmul.f32 %v786, %v512
        %v789 = vadd.f32 %v783, %v787
        %v790 = vadd.f32 %v784, %v788
        %791 = vrot.lane.b32.xlu0 %v789, 16
        %v792 = vpop.permute.xlu0 %791
        %793 = vrot.lane.b32.xlu0 %v790, 16
        %v794 = vpop.permute.xlu0 %793
        %vm795 = vcmp.lt.s32.totalorder %v265, 16
        %v796 = vsel %vm795, %v792, %v794
        %v797 = vsel %vm795, %v794, %v792
        %v800 = vrot.slane %v387, 1
        %v801 = vrot.slane %v388, 1
        %v804 = vmul.f32 %v797, %v800
        %v805 = vmul.f32 %v796, %v801
        %v806 = vadd.f32 %v705, %v804
        %v807 = vadd.f32 %v706, %v805
        %s808 = sld [smem:[#allocation9 + $0x15]]
        %v809 = vstv %s808
        %v810 = vmul.f32 %v809, %v396
        %v811 = vmul.f32 %v809, %v397
        %v812 = vadd.f32 %v810, 0.0
        %v813 = vadd.f32 %v811, 0.0
        %s814 = sld [smem:[#allocation9 + $0x46]]
        %v815 = vstv %s814
        %v816 = vmul.f32 %v815, %v404
        %v817 = vmul.f32 %v815, %v405
        %v818 = vadd.f32 %v812, %v816
        %v819 = vadd.f32 %v813, %v817
        %s820 = sld [smem:[#allocation9 + $0x16]]
        %v821 = vstv %s820
        %v822 = vmul.f32 %v821, %v419
        %v823 = vmul.f32 %v821, %v420
        %v824 = vadd.f32 %v818, %v822
        %v825 = vadd.f32 %v819, %v823
        %s826 = sld [smem:[#allocation9 + $0x47]]
        %v827 = vstv %s826
        %v828 = vmul.f32 %v827, %v427
        %v829 = vmul.f32 %v827, %v428
        %v830 = vadd.f32 %v824, %v828
        %v831 = vadd.f32 %v825, %v829
        %s832 = sld [smem:[#allocation9 + $0x17]]
        %v833 = vstv %s832
        %v834 = vmul.f32 %v833, %v440
        %v835 = vmul.f32 %v833, %v441
        %v836 = vadd.f32 %v830, %v834
        %v837 = vadd.f32 %v831, %v835
        %s838 = sld [smem:[#allocation9 + $0x48]]
        %v839 = vstv %s838
        %v840 = vmul.f32 %v839, %v448
        %v841 = vmul.f32 %v839, %v449
        %v842 = vadd.f32 %v836, %v840
        %v843 = vadd.f32 %v837, %v841
        %s844 = sld [smem:[#allocation9 + $0x18]]
        %v845 = vstv %s844
        %v846 = vmul.f32 %v845, %v371
        %v847 = vmul.f32 %v845, %v372
        %v848 = vadd.f32 %v842, %v846
        %v849 = vadd.f32 %v843, %v847
        %s850 = sld [smem:[#allocation9 + $0x49]]
        %v851 = vstv %s850
        %v852 = vmul.f32 %v851, %v378
        %v853 = vmul.f32 %v851, %v384
        %v854 = vadd.f32 %v848, %v852
        %v855 = vadd.f32 %v849, %v853
        %s856 = sld [smem:[#allocation9 + $0x19]]
        %v857 = vstv %s856
        %v858 = vmul.f32 %v857, %v461
        %v859 = vmul.f32 %v857, %v462
        %v860 = vadd.f32 %v854, %v858
        %v861 = vadd.f32 %v855, %v859
        %s862 = sld [smem:[#allocation9 + $0x4a]]
        %v863 = vstv %s862
        %v864 = vmul.f32 %v863, %v469
        %v865 = vmul.f32 %v863, %v470
        %v866 = vadd.f32 %v860, %v864
        %v867 = vadd.f32 %v861, %v865
        %s868 = sld [smem:[#allocation9 + $0x1a]]
        %v869 = vstv %s868
        %v870 = vmul.f32 %v869, %v482
        %v871 = vmul.f32 %v869, %v483
        %v872 = vadd.f32 %v866, %v870
        %v873 = vadd.f32 %v867, %v871
        %s874 = sld [smem:[#allocation9 + $0x4b]]
        %v875 = vstv %s874
        %v876 = vmul.f32 %v875, %v490
        %v877 = vmul.f32 %v875, %v491
        %v878 = vadd.f32 %v872, %v876
        %v879 = vadd.f32 %v873, %v877
        %s880 = sld [smem:[#allocation9 + $0x1b]]
        %v881 = vstv %s880
        %v882 = vmul.f32 %v881, %v503
        %v883 = vmul.f32 %v881, %v504
        %v884 = vadd.f32 %v878, %v882
        %v885 = vadd.f32 %v879, %v883
        %s886 = sld [smem:[#allocation9 + $0x4c]]
        %v887 = vstv %s886
        %v888 = vmul.f32 %v887, %v511
        %v889 = vmul.f32 %v887, %v512
        %v890 = vadd.f32 %v884, %v888
        %v891 = vadd.f32 %v885, %v889
        %v892 = vadd.f32 %v806, %v890
        %v893 = vadd.f32 %v807, %v891
        %s894 = sld [smem:[#allocation9 + $0x1c]]
        %v895 = vstv %s894
        %v896 = vmul.f32 %v895, %v396
        %v897 = vmul.f32 %v895, %v397
        %v898 = vadd.f32 %v896, 0.0
        %v899 = vadd.f32 %v897, 0.0
        %s900 = sld [smem:[#allocation9 + $0x4d]]
        %v901 = vstv %s900
        %v902 = vmul.f32 %v901, %v404
        %v903 = vmul.f32 %v901, %v405
        %v904 = vadd.f32 %v898, %v902
        %v905 = vadd.f32 %v899, %v903
        %s906 = sld [smem:[#allocation9 + $0x1d]]
        %v907 = vstv %s906
        %v908 = vmul.f32 %v907, %v419
        %v909 = vmul.f32 %v907, %v420
        %v910 = vadd.f32 %v904, %v908
        %v911 = vadd.f32 %v905, %v909
        %s912 = sld [smem:[#allocation9 + $0x4e]]
        %v913 = vstv %s912
        %v914 = vmul.f32 %v913, %v427
        %v915 = vmul.f32 %v913, %v428
        %v916 = vadd.f32 %v910, %v914
        %v917 = vadd.f32 %v911, %v915
        %s918 = sld [smem:[#allocation9 + $0x1e]]
        %v919 = vstv %s918
        %v920 = vmul.f32 %v919, %v440
        %v921 = vmul.f32 %v919, %v441
        %v922 = vadd.f32 %v916, %v920
        %v923 = vadd.f32 %v917, %v921
        %s924 = sld [smem:[#allocation9 + $0x4f]]
        %v925 = vstv %s924
        %v926 = vmul.f32 %v925, %v448
        %v927 = vmul.f32 %v925, %v449
        %v928 = vadd.f32 %v922, %v926
        %v929 = vadd.f32 %v923, %v927
        %s930 = sld [smem:[#allocation9 + $0x1f]]
        %v931 = vstv %s930
        %v932 = vmul.f32 %v931, %v371
        %v933 = vmul.f32 %v931, %v372
        %v934 = vadd.f32 %v928, %v932
        %v935 = vadd.f32 %v929, %v933
        %s936 = sld [smem:[#allocation9 + $0x50]]
        %v937 = vstv %s936
        %v938 = vmul.f32 %v937, %v378
        %v939 = vmul.f32 %v937, %v384
        %v940 = vadd.f32 %v934, %v938
        %v941 = vadd.f32 %v935, %v939
        %s942 = sld [smem:[#allocation9 + $0x20]]
        %v943 = vstv %s942
        %v944 = vmul.f32 %v943, %v461
        %v945 = vmul.f32 %v943, %v462
        %v946 = vadd.f32 %v940, %v944
        %v947 = vadd.f32 %v941, %v945
        %s948 = sld [smem:[#allocation9 + $0x51]]
        %v949 = vstv %s948
        %v950 = vmul.f32 %v949, %v469
        %v951 = vmul.f32 %v949, %v470
        %v952 = vadd.f32 %v946, %v950
        %v953 = vadd.f32 %v947, %v951
        %s954 = sld [smem:[#allocation9 + $0x21]]
        %v955 = vstv %s954
        %v956 = vmul.f32 %v955, %v482
        %v957 = vmul.f32 %v955, %v483
        %v958 = vadd.f32 %v952, %v956
        %v959 = vadd.f32 %v953, %v957
        %s960 = sld [smem:[#allocation9 + $0x52]]
        %v961 = vstv %s960
        %v962 = vmul.f32 %v961, %v490
        %v963 = vmul.f32 %v961, %v491
        %v964 = vadd.f32 %v958, %v962
        %v965 = vadd.f32 %v959, %v963
        %s966 = sld [smem:[#allocation9 + $0x22]]
        %v967 = vstv %s966
        %v968 = vmul.f32 %v967, %v503
        %v969 = vmul.f32 %v967, %v504
        %v970 = vadd.f32 %v964, %v968
        %v971 = vadd.f32 %v965, %v969
        %s972 = sld [smem:[#allocation9 + $0x53]]
        %v973 = vstv %s972
        %v974 = vmul.f32 %v973, %v511
        %v975 = vmul.f32 %v973, %v512
        %v976 = vadd.f32 %v970, %v974
        %v977 = vadd.f32 %v971, %v975
        %978 = vrot.lane.b32.xlu0 %v976, 112
        %v979 = vpop.permute.xlu0 %978
        %980 = vrot.lane.b32.xlu0 %v977, 112
        %v981 = vpop.permute.xlu0 %980
        %vm982 = vcmp.lt.s32.totalorder %v265, 112
        %v983 = vsel %vm982, %v979, %v981
        %v984 = vsel %vm982, %v981, %v979
        %v985 = vrot.slane %v387, 3
        %v986 = vrot.slane %v388, 3
        %v989 = vmul.f32 %v983, %v985
        %v990 = vmul.f32 %v984, %v986
        %v991 = vadd.f32 %v892, %v989
        %v992 = vadd.f32 %v893, %v990
        %s993 = sld [smem:[#allocation9 + $0x23]]
        %v994 = vstv %s993
        %v995 = vmul.f32 %v994, %v396
        %v996 = vmul.f32 %v994, %v397
        %v997 = vadd.f32 %v995, 0.0
        %v998 = vadd.f32 %v996, 0.0
        %s999 = sld [smem:[#allocation9 + $0x54]]
        %v1000 = vstv %s999
        %v1001 = vmul.f32 %v1000, %v404
        %v1002 = vmul.f32 %v1000, %v405
        %v1003 = vadd.f32 %v997, %v1001
        %v1004 = vadd.f32 %v998, %v1002
        %s1005 = sld [smem:[#allocation9 + $0x24]]
        %v1006 = vstv %s1005
        %v1007 = vmul.f32 %v1006, %v419
        %v1008 = vmul.f32 %v1006, %v420
        %v1009 = vadd.f32 %v1003, %v1007
        %v1010 = vadd.f32 %v1004, %v1008
        %s1011 = sld [smem:[#allocation9 + $0x55]]
        %v1012 = vstv %s1011
        %v1013 = vmul.f32 %v1012, %v427
        %v1014 = vmul.f32 %v1012, %v428
        %v1015 = vadd.f32 %v1009, %v1013
        %v1016 = vadd.f32 %v1010, %v1014
        %s1017 = sld [smem:[#allocation9 + $0x25]]
        %v1018 = vstv %s1017
        %v1019 = vmul.f32 %v1018, %v440
        %v1020 = vmul.f32 %v1018, %v441
        %v1021 = vadd.f32 %v1015, %v1019
        %v1022 = vadd.f32 %v1016, %v1020
        %s1023 = sld [smem:[#allocation9 + $0x56]]
        %v1024 = vstv %s1023
        %v1025 = vmul.f32 %v1024, %v448
        %v1026 = vmul.f32 %v1024, %v449
        %v1027 = vadd.f32 %v1021, %v1025
        %v1028 = vadd.f32 %v1022, %v1026
        %s1029 = sld [smem:[#allocation9 + $0x26]]
        %v1030 = vstv %s1029
        %v1031 = vmul.f32 %v1030, %v371
        %v1032 = vmul.f32 %v1030, %v372
        %v1033 = vadd.f32 %v1027, %v1031
        %v1034 = vadd.f32 %v1028, %v1032
        %s1035 = sld [smem:[#allocation9 + $0x57]]
        %v1036 = vstv %s1035
        %v1037 = vmul.f32 %v1036, %v378
        %v1038 = vmul.f32 %v1036, %v384
        %v1039 = vadd.f32 %v1033, %v1037
        %v1040 = vadd.f32 %v1034, %v1038
        %s1041 = sld [smem:[#allocation9 + $0x27]]
        %v1042 = vstv %s1041
        %v1043 = vmul.f32 %v1042, %v461
        %v1044 = vmul.f32 %v1042, %v462
        %v1045 = vadd.f32 %v1039, %v1043
        %v1046 = vadd.f32 %v1040, %v1044
        %s1047 = sld [smem:[#allocation9 + $0x58]]
        %v1048 = vstv %s1047
        %v1049 = vmul.f32 %v1048, %v469
        %v1050 = vmul.f32 %v1048, %v470
        %v1051 = vadd.f32 %v1045, %v1049
        %v1052 = vadd.f32 %v1046, %v1050
        %s1053 = sld [smem:[#allocation9 + $0x28]]
        %v1054 = vstv %s1053
        %v1055 = vmul.f32 %v1054, %v482
        %v1056 = vmul.f32 %v1054, %v483
        %v1057 = vadd.f32 %v1051, %v1055
        %v1058 = vadd.f32 %v1052, %v1056
        %s1059 = sld [smem:[#allocation9 + $0x59]]
        %v1060 = vstv %s1059
        %v1061 = vmul.f32 %v1060, %v490
        %v1062 = vmul.f32 %v1060, %v491
        %v1063 = vadd.f32 %v1057, %v1061
        %v1064 = vadd.f32 %v1058, %v1062
        %s1065 = sld [smem:[#allocation9 + $0x29]]
        %v1066 = vstv %s1065
        %v1067 = vmul.f32 %v1066, %v503
        %v1068 = vmul.f32 %v1066, %v504
        %v1069 = vadd.f32 %v1063, %v1067
        %v1070 = vadd.f32 %v1064, %v1068
        %s1071 = sld [smem:[#allocation9 + $0x5a]]
        %v1072 = vstv %s1071
        %v1073 = vmul.f32 %v1072, %v511
        %v1074 = vmul.f32 %v1072, %v512
        %v1075 = vadd.f32 %v1069, %v1073
        %v1076 = vadd.f32 %v1070, %v1074
        %1077 = vrot.lane.b32.xlu0 %v1075, 96
        %v1078 = vpop.permute.xlu0 %1077
        %1079 = vrot.lane.b32.xlu0 %v1076, 96
        %v1080 = vpop.permute.xlu0 %1079
        %vm1081 = vcmp.lt.s32.totalorder %v265, 96
        %v1082 = vsel %vm1081, %v1078, %v1080
        %v1083 = vsel %vm1081, %v1080, %v1078
        %v1084 = vrot.slane %v387, 4
        %v1085 = vrot.slane %v388, 4
        %v1088 = vmul.f32 %v1082, %v1084
        %v1089 = vmul.f32 %v1083, %v1085
        %v1090 = vadd.f32 %v991, %v1088
        %v1091 = vadd.f32 %v992, %v1089
        %s1092 = sld [smem:[#allocation9 + $0x2a]]
        %v1093 = vstv %s1092
        %v1094 = vmul.f32 %v1093, %v396
        %v1095 = vmul.f32 %v1093, %v397
        %v1096 = vadd.f32 %v1094, 0.0
        %v1097 = vadd.f32 %v1095, 0.0
        %s1098 = sld [smem:[#allocation9 + $0x5b]]
        %v1099 = vstv %s1098
        %v1100 = vmul.f32 %v1099, %v404
        %v1101 = vmul.f32 %v1099, %v405
        %v1102 = vadd.f32 %v1096, %v1100
        %v1103 = vadd.f32 %v1097, %v1101
        %s1104 = sld [smem:[#allocation9 + $0x2b]]
        %v1105 = vstv %s1104
        %v1106 = vmul.f32 %v1105, %v419
        %v1107 = vmul.f32 %v1105, %v420
        %v1108 = vadd.f32 %v1102, %v1106
        %v1109 = vadd.f32 %v1103, %v1107
        %s1110 = sld [smem:[#allocation9 + $0x5c]]
        %v1111 = vstv %s1110
        %v1112 = vmul.f32 %v1111, %v427
        %v1113 = vmul.f32 %v1111, %v428
        %v1114 = vadd.f32 %v1108, %v1112
        %v1115 = vadd.f32 %v1109, %v1113
        %s1116 = sld [smem:[#allocation9 + $0x2c]]
        %v1117 = vstv %s1116
        %v1118 = vmul.f32 %v1117, %v440
        %v1119 = vmul.f32 %v1117, %v441
        %v1120 = vadd.f32 %v1114, %v1118
        %v1121 = vadd.f32 %v1115, %v1119
        %s1122 = sld [smem:[#allocation9 + $0x5d]]
        %v1123 = vstv %s1122
        %v1124 = vmul.f32 %v1123, %v448
        %v1125 = vmul.f32 %v1123, %v449
        %v1126 = vadd.f32 %v1120, %v1124
        %v1127 = vadd.f32 %v1121, %v1125
        %s1128 = sld [smem:[#allocation9 + $0x2d]]
        %v1129 = vstv %s1128
        %v1130 = vmul.f32 %v1129, %v371
        %v1131 = vmul.f32 %v1129, %v372
        %v1132 = vadd.f32 %v1126, %v1130
        %v1133 = vadd.f32 %v1127, %v1131
        %s1134 = sld [smem:[#allocation9 + $0x5e]]
        %v1135 = vstv %s1134
        %v1136 = vmul.f32 %v1135, %v378
        %v1137 = vmul.f32 %v1135, %v384
        %v1138 = vadd.f32 %v1132, %v1136
        %v1139 = vadd.f32 %v1133, %v1137
        %s1140 = sld [smem:[#allocation9 + $0x2e]]
        %v1141 = vstv %s1140
        %v1142 = vmul.f32 %v1141, %v461
        %v1143 = vmul.f32 %v1141, %v462
        %v1144 = vadd.f32 %v1138, %v1142
        %v1145 = vadd.f32 %v1139, %v1143
        %s1146 = sld [smem:[#allocation9 + $0x5f]]
        %v1147 = vstv %s1146
        %v1148 = vmul.f32 %v1147, %v469
        %v1149 = vmul.f32 %v1147, %v470
        %v1150 = vadd.f32 %v1144, %v1148
        %v1151 = vadd.f32 %v1145, %v1149
        %s1152 = sld [smem:[#allocation9 + $0x2f]]
        %v1153 = vstv %s1152
        %v1154 = vmul.f32 %v1153, %v482
        %v1155 = vmul.f32 %v1153, %v483
        %v1156 = vadd.f32 %v1150, %v1154
        %v1157 = vadd.f32 %v1151, %v1155
        %s1158 = sld [smem:[#allocation9 + $0x60]]
        %v1159 = vstv %s1158
        %v1160 = vmul.f32 %v1159, %v490
        %v1161 = vmul.f32 %v1159, %v491
        %v1162 = vadd.f32 %v1156, %v1160
        %v1163 = vadd.f32 %v1157, %v1161
        %s1164 = sld [smem:[#allocation9 + $0x30]]
        %v1165 = vstv %s1164
        %v1166 = vmul.f32 %v1165, %v503
        %v1167 = vmul.f32 %v1165, %v504
        %v1168 = vadd.f32 %v1162, %v1166
        %v1169 = vadd.f32 %v1163, %v1167
        %s1170 = sld [smem:[#allocation9 + $0x61]]
        %v1171 = vstv %s1170
        %v1172 = vmul.f32 %v1171, %v511
        %v1173 = vmul.f32 %v1171, %v512
        %v1174 = vadd.f32 %v1168, %v1172
        %v1175 = vadd.f32 %v1169, %v1173
        %1176 = vrot.lane.b32.xlu0 %v1174, 80
        %v1177 = vpop.permute.xlu0 %1176
        %1178 = vrot.lane.b32.xlu0 %v1175, 80
        %v1179 = vpop.permute.xlu0 %1178
        %vm1180 = vcmp.lt.s32.totalorder %v265, 80
        %v1181 = vsel %vm1180, %v1177, %v1179
        %v1182 = vsel %vm1180, %v1179, %v1177
        %v1183 = vrot.slane %v387, 5
        %v1184 = vrot.slane %v388, 5
        %v1187 = vmul.f32 %v1181, %v1183
        %v1188 = vmul.f32 %v1182, %v1184
        %v1189 = vadd.f32 %v1090, %v1187
        %v1190 = vadd.f32 %v1091, %v1188
        %v1191 = vxor.u32 %v1189, 2147483648
        %v1192 = vxor.u32 %v1190, 2147483648
        %v1193 = vmul.f32 %v1191, 1.442695
        %v1194 = vpow.pop %v1193
        %v1195 = vmul.f32 %v1192, 1.442695
        %v1196 = vpow.pop %v1195
        %v1197 = vadd.f32 %v1194, 1.0
        %v1198 = vadd.f32 %v1196, 1.0
        %v1199 = vrcp.pop %v1197
        %v1200 = vmul.f32 1.0, %v1199
        %v1201 = vrcp.pop %v1198
        %v1202 = vmul.f32 1.0, %v1201
        %v1203 = vlaneseq
        %v1204 = vshrl.u32 %v1203, 7
        %v1205 = vsub.s32 0, %v1204
        %v1206 = vrot.slane %v1200, %v1205
        %v1207 = vlaneseq
        %v1208 = vshrl.u32 %v1207, 7
        %v1209 = vsub.s32 0, %v1208
        %v1210 = vrot.slane %v1202, %v1209
        %v1211 = vmul.f32 %v356, %v1206
        %v1212 = vmul.f32 %v357, %v1210
        %1213 = vst [vmem:[%s254] sm:$0xff] %v1211
        %1214 = vst [vmem:[%s254 + $0x8] sm:$0xff] %v1212
        %s1215 = sand.u32 %s120, 1
        %s1216 = scalar_lea.sflag [#allocation4], %s1215
        %s1217 = sand.u32 %s120, 1
        %s1218 = smul.addr %s1217, 16
        %s1219 = scalar_lea.vmem [#allocation10], %s1218
        // Predicated region
        $region53: #{tpu_custom_call.1} parent=35 // pred_check
          %p1220 = pneg %p130
        $region54: #{tpu_custom_call.1} parent=35 // pred_check_branch
          %1222 = sbr.rel (%p1220) target = $region56
        $region55: #{tpu_custom_call.1} parent=35 // pred_region
          %s1224 = ssub.s32 256, 256
          %1225 = vsyncadd %s1216, %s1224
          %s1226 = smul.addr %s23, 2
          %s1227 = smul.addr %s1226, 128
          %s1228 = scalar_lea.hbm %s4, %s1227
          %s1230 = sshll.u32 %s1219, 4
          %s1231 = int_to_ptr.vmem [resolvable:$true] %s1230
          %1233 = dma.vmem_to_hbm [thread:$0]  %s1231, 256, %s1228, %s1216
        $region56: #{tpu_custom_call.1} parent=35 // pred_fallthru
          _
      $region36: #{tpu_custom_call.1} parent=5 // pred_fallthru
        _
      %p1234 = scmp.le.s32.totalorder 2, %s18
      // Predicated region
      $region57: #{tpu_custom_call.1} parent=5 // pred_check
        %p1235 = pneg %p1234
      $region58: #{tpu_custom_call.1} parent=5 // pred_check_branch
        %1237 = sbr.rel (%p1235) target = $region60
      $region59: #{tpu_custom_call.1} parent=5 // pred_region
        %s1238 = ssub.s32 %s18, 2
        // Predicated region
        $region61: #{tpu_custom_call.1} parent=59 // pred_check
          %p1239 = pneg %p136
        $region62: #{tpu_custom_call.1} parent=59 // pred_check_branch
          %1241 = sbr.rel (%p1239) target = $region64
        $region63: #{tpu_custom_call.1} parent=59 // pred_region
          %s1242 = sand.u32 %s121, 1
          %s1243 = scalar_lea.sflag [#allocation4], %s1242
          %s1244 = sand.u32 %s121, 1
          %s1245 = smul.addr %s1244, 16
          %s1246 = scalar_lea.vmem [#allocation10], %s1245
          %1247 = dma.done %s1243, 256
        $region64: #{tpu_custom_call.1} parent=59 // pred_fallthru
          _
      $region60: #{tpu_custom_call.1} parent=5 // pred_fallthru
        _
    $region6: #{tpu_custom_call.1} parent=1 // loop_footer
      %s22 = sadd.s32 1, %s18
    $region7: #{tpu_custom_call.1} parent=1 // loop_footer_branch
      %17 = sbr.rel target = $region3
    $region8: #{tpu_custom_call.1} parent=1 // loop_exit
      _
    %1248 = vsyncpa [#allocation3], 1
    %s1249 = scalar_lea.sflag [#allocation3], 1
    %1250 = vsyncpa %s1249, 1
    %1251 = vsyncpa [#allocation7], 1
    %1252 = vsyncpa [#allocation4], 1
    %s1253 = scalar_lea.sflag [#allocation4], 1
    %1254 = vsyncpa %s1253, 1
    %1255 = vsyncpa [#allocation5], 1
    %s1256 = scalar_lea.sflag [#allocation5], 1
    %1257 = vsyncpa %s1256, 1

</llo_original>
